<compile_context>
chip_gen: v7x
topology: tpu7x:2x2x1
jax: 0.10.0
libtpu: 0.0.40
codegen_flags: <defaults>
</compile_context>

<pallas_src>
import functools

import jax
import jax.numpy as jnp
import numpy as np
from jax.experimental import pallas as pl
from jax.experimental.pallas import tpu as pltpu

BN_EPS = 1e-5


def _fused_basic_block_kernel(x_ref, w1_ref, b1_ref, w2_ref, b2_ref, mask_ref,
                              out_ref, *, W, P, DP):
    """conv1+BN1+ReLU -> conv2+BN2 -> +residual for one batch element.

    x_ref    : (1, C, DP)   input volume, (D, H, W) flattened onto the lanes (DP = D*H*W)
    w*_ref   : (3, C, 9*C)  BN-folded conv weights, one (C, 9*C) slab per kd tap group
    b*_ref   : (C, 1)       BN-folded bias
    mask_ref : (27, C, DP)  0/1 tap-validity masks (pre-broadcast over C in the wrapper)
    out_ref  : (1, C, DP)   output volume
    """
    f32 = jnp.float32
    x = x_ref[0].astype(f32)                                       # (C, DP)

    def conv_stage(v, w_ref, b_ref):
        """Folded 3x3x3 conv + BN of v (C, DP) -> (C, DP), f32 accumulation."""
        acc = b_ref[...]                                           # (C, 1), broadcasts over lanes
        for kd in range(3):
            rows = []
            for kh in range(3):
                for kw in range(3):
                    off = (kd - 1) * P + (kh - 1) * W + (kw - 1)   # flat source offset
                    tap = kd * 9 + kh * 3 + kw
                    # t[c, q] = v[c, q + off]; wrap-around lanes are zeroed by the mask.
                    t = v if off == 0 else pltpu.roll(v, shift=(-off) % DP, axis=1)
                    if tap != 13:                                  # center tap needs no mask
                        t = t * mask_ref[tap]
                    rows.append(t)
            patch = jnp.concatenate(rows, axis=0)                  # (9*C, DP)
            # TODO(synk): optionally cast patch / w_ref[kd] to bf16 on v6e/v7x (keep f32 acc).
            acc = acc + jnp.dot(w_ref[kd], patch, preferred_element_type=f32)
        return acc

    y1 = jnp.maximum(conv_stage(x, w1_ref, b1_ref), 0.0)           # stage-1 act never leaves VMEM
    y2 = conv_stage(y1, w2_ref, b2_ref)
    out_ref[0] = (y2 + x).astype(out_ref.dtype)                    # residual add, no final ReLU


def _make_tap_masks(D, H, W, C):
    """(27, C, D*H*W) 0/1 masks: is source voxel (d+kd-1, h+kh-1, w+kw-1) inside the volume."""
    dd, hh, ww = np.meshgrid(np.arange(D), np.arange(H), np.arange(W), indexing="ij")
    taps = []
    for kd in range(3):
        for kh in range(3):
            for kw in range(3):
                valid = ((dd + kd - 1 >= 0) & (dd + kd - 1 < D)
                         & (hh + kh - 1 >= 0) & (hh + kh - 1 < H)
                         & (ww + kw - 1 >= 0) & (ww + kw - 1 < W))
                taps.append(valid.reshape(D * H * W))
    m = np.stack(taps, axis=0).astype(np.float32)[:, None, :]      # (27, 1, DP)
    # Pre-broadcast over channels so the kernel never re-emits a broadcast_in_dim per tap.
    return jnp.asarray(np.ascontiguousarray(np.broadcast_to(m, (27, C, D * H * W))))


def _fold_bn_into_conv(w_oidhw, gamma, beta, mean, var):
    """Fold eval-mode BN into the conv. Returns weights (3, Cout, 9*Cin) and bias (Cout, 1)."""
    scale = gamma / jnp.sqrt(var + BN_EPS)
    bias = beta - mean * scale
    cout, cin = w_oidhw.shape[0], w_oidhw.shape[1]
    # OIDHW -> (O, kD, kH, kW, I); within a kd group the row order is (kh, kw, ci),
    # matching the patch row order built in the kernel.
    w = jnp.transpose(w_oidhw, (0, 2, 3, 4, 1)) * scale[:, None, None, None, None]
    w = w.reshape(cout, 3, 9 * cin)
    w = jnp.transpose(w, (1, 0, 2))                                # (3, Cout, 9*Cin)
    return w.astype(jnp.float32), bias[:, None].astype(jnp.float32)


def basic_block_3d(x_ncdhw, params):
    """Forward of BasicBlock_3D. x_ncdhw: (N, C, D, H, W) float32 (PyTorch NCDHW)."""
    N, C, D, H, W = x_ncdhw.shape
    P = H * W
    DP = D * P                         # lane extent; multiple of 128 => unmasked stores

    x_flat = x_ncdhw.reshape(N, C, DP)  # no-copy reshape: (D, H, W) flattened onto lanes
    masks = _make_tap_masks(D, H, W, C)

    kernel = functools.partial(_fused_basic_block_kernel, W=W, P=P, DP=DP)

    flops = N * 2 * (2 * C * (27 * C) * DP)                        # two 3x3x3 convs
    bytes_accessed = 4 * (2 * N * C * DP + 2 * (3 * C * 9 * C + C) + 27 * C * DP)

    # TODO(synk): for volumes whose (C, D*H*W) slab (x2 pipeline buffers) exceeds VMEM
    # (64 MiB on v7x), tile D per grid step with a halo of 2 recomputed stage-1 slices
    # per chunk instead of keeping the whole per-batch volume resident.
    y = pl.pallas_call(
        kernel,
        out_shape=jax.ShapeDtypeStruct((N, C, DP), x_ncdhw.dtype),
        grid_spec=pltpu.PrefetchScalarGridSpec(
            num_scalar_prefetch=0,
            grid=(N,),
            in_specs=[
                pl.BlockSpec((1, C, DP), lambda n: (n, 0, 0)),
                # Weights / biases / masks: constant index_map => DMA'd once, stay resident.
                pl.BlockSpec((3, C, 9 * C), lambda n: (0, 0, 0)),
                pl.BlockSpec((C, 1), lambda n: (0, 0)),
                pl.BlockSpec((3, C, 9 * C), lambda n: (0, 0, 0)),
                pl.BlockSpec((C, 1), lambda n: (0, 0)),
                pl.BlockSpec((27, C, DP), lambda n: (0, 0, 0)),
            ],
            out_specs=pl.BlockSpec((1, C, DP), lambda n: (n, 0, 0)),
        ),
        compiler_params=pltpu.CompilerParams(
            dimension_semantics=("parallel",),          # batch axis feeds both v7x cores
            vmem_limit_bytes=64 * 1024 * 1024),
        cost_estimate=pl.CostEstimate(flops=flops, transcendentals=0,
                                      bytes_accessed=bytes_accessed),
    )(x_flat, params["w1"], params["b1"], params["w2"], params["b2"], masks)

    return y.reshape(N, C, D, H, W)


def _reference(x, w1_oidhw, w2_oidhw, bn1, bn2):
    """Pure-JAX reference in NCDHW, mirroring the PyTorch module (eval-mode BN)."""
    def conv3d(x, w):
        return jax.lax.conv_general_dilated(
            x, w, window_strides=(1, 1, 1),
            padding=((1, 1), (1, 1), (1, 1)),
            dimension_numbers=("NCDHW", "OIDHW", "NCDHW"))

    def bn(x, gamma, beta, mean, var):
        sh = (1, -1, 1, 1, 1)
        return ((x - mean.reshape(sh)) / jnp.sqrt(var.reshape(sh) + BN_EPS)
                * gamma.reshape(sh) + beta.reshape(sh))

    out = jnp.maximum(bn(conv3d(x, w1_oidhw), *bn1), 0.0)
    out = bn(conv3d(out, w2_oidhw), *bn2)
    return out + x


if __name__ == "__main__":
    # Small shapes: inplanes = planes = 8 (stride=1, so the residual add is valid).
    # D*H*W = 256 so every block is lane-dense (multiple of 128).
    N, C, D, H, W = 2, 8, 4, 8, 8

    key = jax.random.PRNGKey(0)
    keys = jax.random.split(key, 11)
    x = jax.random.normal(keys[0], (N, C, D, H, W), dtype=jnp.float32)

    # Conv weights in PyTorch OIDHW layout, deterministic init.
    w1_oidhw = 0.1 * jax.random.normal(keys[1], (C, C, 3, 3, 3), dtype=jnp.float32)
    w2_oidhw = 0.1 * jax.random.normal(keys[2], (C, C, 3, 3, 3), dtype=jnp.float32)

    # BatchNorm3d params (eval mode, running stats), deterministic init.
    g1 = 1.0 + 0.1 * jax.random.normal(keys[3], (C,), dtype=jnp.float32)
    b1 = 0.1 * jax.random.normal(keys[4], (C,), dtype=jnp.float32)
    m1 = 0.1 * jax.random.normal(keys[5], (C,), dtype=jnp.float32)
    v1 = jnp.abs(jax.random.normal(keys[6], (C,), dtype=jnp.float32)) + 0.5
    g2 = 1.0 + 0.1 * jax.random.normal(keys[7], (C,), dtype=jnp.float32)
    b2 = 0.1 * jax.random.normal(keys[8], (C,), dtype=jnp.float32)
    m2 = 0.1 * jax.random.normal(keys[9], (C,), dtype=jnp.float32)
    v2 = jnp.abs(jax.random.normal(keys[10], (C,), dtype=jnp.float32)) + 0.5

    w1m, b1m = _fold_bn_into_conv(w1_oidhw, g1, b1, m1, v1)
    w2m, b2m = _fold_bn_into_conv(w2_oidhw, g2, b2, m2, v2)
    params = {"w1": w1m, "b1": b1m, "w2": w2m, "b2": b2m}

    out = jax.jit(basic_block_3d)(x, params)
    out = jax.block_until_ready(out)

    ref = _reference(x, w1_oidhw, w2_oidhw, (g1, b1, m1, v1), (g2, b2, m2, v2))
    np.testing.assert_allclose(np.asarray(out), np.asarray(ref), rtol=1e-3, atol=1e-3)

    print("KERNEL_OK")
</pallas_src>

<mosaic_0001>
module attributes {stable_mosaic.version = 11 : i64} {
  func.func @_fused_basic_block_kernel(%arg0: i32, %arg1: memref<1x8x256xf32, #tpu.memory_space<vmem>>, %arg2: memref<3x8x72xf32, #tpu.memory_space<vmem>>, %arg3: memref<8x1xf32, #tpu.memory_space<vmem>>, %arg4: memref<3x8x72xf32, #tpu.memory_space<vmem>>, %arg5: memref<8x1xf32, #tpu.memory_space<vmem>>, %arg6: memref<27x8x256xf32, #tpu.memory_space<vmem>>, %arg7: memref<1x8x256xf32, #tpu.memory_space<vmem>>) attributes {dimension_semantics = [#tpu.dimension_semantics<parallel>], iteration_bounds = array<i64: 2>, scalar_prefetch = 0 : i64, scratch_operands = 0 : i64, tpu.core_type = #tpu.core_type<tc>, window_params = [{transform_indices = @transform_0, window_bounds = array<i64: 1, 8, 256>}, {pipeline_mode = #tpu.pipeline_mode<synchronous>, transform_indices = @transform_1, window_bounds = array<i64: 3, 8, 72>}, {pipeline_mode = #tpu.pipeline_mode<synchronous>, transform_indices = @transform_2, window_bounds = array<i64: 8, 1>}, {pipeline_mode = #tpu.pipeline_mode<synchronous>, transform_indices = @transform_3, window_bounds = array<i64: 3, 8, 72>}, {pipeline_mode = #tpu.pipeline_mode<synchronous>, transform_indices = @transform_4, window_bounds = array<i64: 8, 1>}, {pipeline_mode = #tpu.pipeline_mode<synchronous>, transform_indices = @transform_5, window_bounds = array<i64: 27, 8, 256>}, {transform_indices = @transform_6, window_bounds = array<i64: 1, 8, 256>}]} {
    %c0 = arith.constant 0 : index
    %c0_0 = arith.constant 0 : index
    %c0_1 = arith.constant 0 : index
    %0 = vector.load %arg1[%c0, %c0_0, %c0_1] : memref<1x8x256xf32, #tpu.memory_space<vmem>>, vector<1x8x256xf32>
    %1 = vector.shape_cast %0 : vector<1x8x256xf32> to vector<8x256xf32>
    %c0_2 = arith.constant 0 : index
    %c0_3 = arith.constant 0 : index
    %2 = vector.load %arg3[%c0_2, %c0_3] : memref<8x1xf32, #tpu.memory_space<vmem>>, vector<8x1xf32>
    %c73_i32 = arith.constant 73 : i32
    %3 = tpu.dynamic_rotate %1 by %c73_i32 dim 1 : vector<8x256xf32>, i32 -> vector<8x256xf32>
    %c0_4 = arith.constant 0 : index
    %c0_5 = arith.constant 0 : index
    %c0_6 = arith.constant 0 : index
    %4 = vector.load %arg6[%c0_4, %c0_5, %c0_6] : memref<27x8x256xf32, #tpu.memory_space<vmem>>, vector<1x8x256xf32>
    %5 = vector.shape_cast %4 : vector<1x8x256xf32> to vector<8x256xf32>
    %6 = arith.mulf %3, %5 : vector<8x256xf32>
    %c72_i32 = arith.constant 72 : i32
    %7 = tpu.dynamic_rotate %1 by %c72_i32 dim 1 : vector<8x256xf32>, i32 -> vector<8x256xf32>
    %c1 = arith.constant 1 : index
    %c0_7 = arith.constant 0 : index
    %c0_8 = arith.constant 0 : index
    %8 = vector.load %arg6[%c1, %c0_7, %c0_8] : memref<27x8x256xf32, #tpu.memory_space<vmem>>, vector<1x8x256xf32>
    %9 = vector.shape_cast %8 : vector<1x8x256xf32> to vector<8x256xf32>
    %10 = arith.mulf %7, %9 : vector<8x256xf32>
    %c71_i32 = arith.constant 71 : i32
    %11 = tpu.dynamic_rotate %1 by %c71_i32 dim 1 : vector<8x256xf32>, i32 -> vector<8x256xf32>
    %c2 = arith.constant 2 : index
    %c0_9 = arith.constant 0 : index
    %c0_10 = arith.constant 0 : index
    %12 = vector.load %arg6[%c2, %c0_9, %c0_10] : memref<27x8x256xf32, #tpu.memory_space<vmem>>, vector<1x8x256xf32>
    %13 = vector.shape_cast %12 : vector<1x8x256xf32> to vector<8x256xf32>
    %14 = arith.mulf %11, %13 : vector<8x256xf32>
    %c65_i32 = arith.constant 65 : i32
    %15 = tpu.dynamic_rotate %1 by %c65_i32 dim 1 : vector<8x256xf32>, i32 -> vector<8x256xf32>
    %c3 = arith.constant 3 : index
    %c0_11 = arith.constant 0 : index
    %c0_12 = arith.constant 0 : index
    %16 = vector.load %arg6[%c3, %c0_11, %c0_12] : memref<27x8x256xf32, #tpu.memory_space<vmem>>, vector<1x8x256xf32>
    %17 = vector.shape_cast %16 : vector<1x8x256xf32> to vector<8x256xf32>
    %18 = arith.mulf %15, %17 : vector<8x256xf32>
    %c64_i32 = arith.constant 64 : i32
    %19 = tpu.dynamic_rotate %1 by %c64_i32 dim 1 : vector<8x256xf32>, i32 -> vector<8x256xf32>
    %c4 = arith.constant 4 : index
    %c0_13 = arith.constant 0 : index
    %c0_14 = arith.constant 0 : index
    %20 = vector.load %arg6[%c4, %c0_13, %c0_14] : memref<27x8x256xf32, #tpu.memory_space<vmem>>, vector<1x8x256xf32>
    %21 = vector.shape_cast %20 : vector<1x8x256xf32> to vector<8x256xf32>
    %22 = arith.mulf %19, %21 : vector<8x256xf32>
    %c63_i32 = arith.constant 63 : i32
    %23 = tpu.dynamic_rotate %1 by %c63_i32 dim 1 : vector<8x256xf32>, i32 -> vector<8x256xf32>
    %c5 = arith.constant 5 : index
    %c0_15 = arith.constant 0 : index
    %c0_16 = arith.constant 0 : index
    %24 = vector.load %arg6[%c5, %c0_15, %c0_16] : memref<27x8x256xf32, #tpu.memory_space<vmem>>, vector<1x8x256xf32>
    %25 = vector.shape_cast %24 : vector<1x8x256xf32> to vector<8x256xf32>
    %26 = arith.mulf %23, %25 : vector<8x256xf32>
    %c57_i32 = arith.constant 57 : i32
    %27 = tpu.dynamic_rotate %1 by %c57_i32 dim 1 : vector<8x256xf32>, i32 -> vector<8x256xf32>
    %c6 = arith.constant 6 : index
    %c0_17 = arith.constant 0 : index
    %c0_18 = arith.constant 0 : index
    %28 = vector.load %arg6[%c6, %c0_17, %c0_18] : memref<27x8x256xf32, #tpu.memory_space<vmem>>, vector<1x8x256xf32>
    %29 = vector.shape_cast %28 : vector<1x8x256xf32> to vector<8x256xf32>
    %30 = arith.mulf %27, %29 : vector<8x256xf32>
    %c56_i32 = arith.constant 56 : i32
    %31 = tpu.dynamic_rotate %1 by %c56_i32 dim 1 : vector<8x256xf32>, i32 -> vector<8x256xf32>
    %c7 = arith.constant 7 : index
    %c0_19 = arith.constant 0 : index
    %c0_20 = arith.constant 0 : index
    %32 = vector.load %arg6[%c7, %c0_19, %c0_20] : memref<27x8x256xf32, #tpu.memory_space<vmem>>, vector<1x8x256xf32>
    %33 = vector.shape_cast %32 : vector<1x8x256xf32> to vector<8x256xf32>
    %34 = arith.mulf %31, %33 : vector<8x256xf32>
    %c55_i32 = arith.constant 55 : i32
    %35 = tpu.dynamic_rotate %1 by %c55_i32 dim 1 : vector<8x256xf32>, i32 -> vector<8x256xf32>
    %c8 = arith.constant 8 : index
    %c0_21 = arith.constant 0 : index
    %c0_22 = arith.constant 0 : index
    %36 = vector.load %arg6[%c8, %c0_21, %c0_22] : memref<27x8x256xf32, #tpu.memory_space<vmem>>, vector<1x8x256xf32>
    %37 = vector.shape_cast %36 : vector<1x8x256xf32> to vector<8x256xf32>
    %38 = arith.mulf %35, %37 : vector<8x256xf32>
    %39 = tpu.concatenate %6, %10, %14, %18, %22, %26, %30, %34, %38 in 0 : vector<8x256xf32>, vector<8x256xf32>, vector<8x256xf32>, vector<8x256xf32>, vector<8x256xf32>, vector<8x256xf32>, vector<8x256xf32>, vector<8x256xf32>, vector<8x256xf32> -> vector<72x256xf32>
    %c0_23 = arith.constant 0 : index
    %c0_24 = arith.constant 0 : index
    %c0_25 = arith.constant 0 : index
    %40 = vector.load %arg2[%c0_23, %c0_24, %c0_25] : memref<3x8x72xf32, #tpu.memory_space<vmem>>, vector<1x8x72xf32>
    %41 = vector.shape_cast %40 : vector<1x8x72xf32> to vector<8x72xf32>
    %cst = arith.constant dense<0.000000e+00> : vector<8x256xf32>
    %42 = tpu.matmul %41, %39, %cst {dimension_numbers = #tpu.dot_dimension_numbers<[1], [0], [0], [1], [0, 0, 1, 1], [], []>} : vector<8x72xf32>, vector<72x256xf32>, vector<8x256xf32> -> vector<8x256xf32>
    %43 = vector.broadcast %2 : vector<8x1xf32> to vector<8x256xf32>
    %44 = arith.addf %43, %42 : vector<8x256xf32>
    %c9_i32 = arith.constant 9 : i32
    %45 = tpu.dynamic_rotate %1 by %c9_i32 dim 1 : vector<8x256xf32>, i32 -> vector<8x256xf32>
    %c9 = arith.constant 9 : index
    %c0_26 = arith.constant 0 : index
    %c0_27 = arith.constant 0 : index
    %46 = vector.load %arg6[%c9, %c0_26, %c0_27] : memref<27x8x256xf32, #tpu.memory_space<vmem>>, vector<1x8x256xf32>
    %47 = vector.shape_cast %46 : vector<1x8x256xf32> to vector<8x256xf32>
    %48 = arith.mulf %45, %47 : vector<8x256xf32>
    %c8_i32 = arith.constant 8 : i32
    %49 = tpu.dynamic_rotate %1 by %c8_i32 dim 1 : vector<8x256xf32>, i32 -> vector<8x256xf32>
    %c10 = arith.constant 10 : index
    %c0_28 = arith.constant 0 : index
    %c0_29 = arith.constant 0 : index
    %50 = vector.load %arg6[%c10, %c0_28, %c0_29] : memref<27x8x256xf32, #tpu.memory_space<vmem>>, vector<1x8x256xf32>
    %51 = vector.shape_cast %50 : vector<1x8x256xf32> to vector<8x256xf32>
    %52 = arith.mulf %49, %51 : vector<8x256xf32>
    %c7_i32 = arith.constant 7 : i32
    %53 = tpu.dynamic_rotate %1 by %c7_i32 dim 1 : vector<8x256xf32>, i32 -> vector<8x256xf32>
    %c11 = arith.constant 11 : index
    %c0_30 = arith.constant 0 : index
    %c0_31 = arith.constant 0 : index
    %54 = vector.load %arg6[%c11, %c0_30, %c0_31] : memref<27x8x256xf32, #tpu.memory_space<vmem>>, vector<1x8x256xf32>
    %55 = vector.shape_cast %54 : vector<1x8x256xf32> to vector<8x256xf32>
    %56 = arith.mulf %53, %55 : vector<8x256xf32>
    %c1_i32 = arith.constant 1 : i32
    %57 = tpu.dynamic_rotate %1 by %c1_i32 dim 1 : vector<8x256xf32>, i32 -> vector<8x256xf32>
    %c12 = arith.constant 12 : index
    %c0_32 = arith.constant 0 : index
    %c0_33 = arith.constant 0 : index
    %58 = vector.load %arg6[%c12, %c0_32, %c0_33] : memref<27x8x256xf32, #tpu.memory_space<vmem>>, vector<1x8x256xf32>
    %59 = vector.shape_cast %58 : vector<1x8x256xf32> to vector<8x256xf32>
    %60 = arith.mulf %57, %59 : vector<8x256xf32>
    %c255_i32 = arith.constant 255 : i32
    %61 = tpu.dynamic_rotate %1 by %c255_i32 dim 1 : vector<8x256xf32>, i32 -> vector<8x256xf32>
    %c14 = arith.constant 14 : index
    %c0_34 = arith.constant 0 : index
    %c0_35 = arith.constant 0 : index
    %62 = vector.load %arg6[%c14, %c0_34, %c0_35] : memref<27x8x256xf32, #tpu.memory_space<vmem>>, vector<1x8x256xf32>
    %63 = vector.shape_cast %62 : vector<1x8x256xf32> to vector<8x256xf32>
    %64 = arith.mulf %61, %63 : vector<8x256xf32>
    %c249_i32 = arith.constant 249 : i32
    %65 = tpu.dynamic_rotate %1 by %c249_i32 dim 1 : vector<8x256xf32>, i32 -> vector<8x256xf32>
    %c15 = arith.constant 15 : index
    %c0_36 = arith.constant 0 : index
    %c0_37 = arith.constant 0 : index
    %66 = vector.load %arg6[%c15, %c0_36, %c0_37] : memref<27x8x256xf32, #tpu.memory_space<vmem>>, vector<1x8x256xf32>
    %67 = vector.shape_cast %66 : vector<1x8x256xf32> to vector<8x256xf32>
    %68 = arith.mulf %65, %67 : vector<8x256xf32>
    %c248_i32 = arith.constant 248 : i32
    %69 = tpu.dynamic_rotate %1 by %c248_i32 dim 1 : vector<8x256xf32>, i32 -> vector<8x256xf32>
    %c16 = arith.constant 16 : index
    %c0_38 = arith.constant 0 : index
    %c0_39 = arith.constant 0 : index
    %70 = vector.load %arg6[%c16, %c0_38, %c0_39] : memref<27x8x256xf32, #tpu.memory_space<vmem>>, vector<1x8x256xf32>
    %71 = vector.shape_cast %70 : vector<1x8x256xf32> to vector<8x256xf32>
    %72 = arith.mulf %69, %71 : vector<8x256xf32>
    %c247_i32 = arith.constant 247 : i32
    %73 = tpu.dynamic_rotate %1 by %c247_i32 dim 1 : vector<8x256xf32>, i32 -> vector<8x256xf32>
    %c17 = arith.constant 17 : index
    %c0_40 = arith.constant 0 : index
    %c0_41 = arith.constant 0 : index
    %74 = vector.load %arg6[%c17, %c0_40, %c0_41] : memref<27x8x256xf32, #tpu.memory_space<vmem>>, vector<1x8x256xf32>
    %75 = vector.shape_cast %74 : vector<1x8x256xf32> to vector<8x256xf32>
    %76 = arith.mulf %73, %75 : vector<8x256xf32>
    %77 = tpu.concatenate %48, %52, %56, %60, %1, %64, %68, %72, %76 in 0 : vector<8x256xf32>, vector<8x256xf32>, vector<8x256xf32>, vector<8x256xf32>, vector<8x256xf32>, vector<8x256xf32>, vector<8x256xf32>, vector<8x256xf32>, vector<8x256xf32> -> vector<72x256xf32>
    %c1_42 = arith.constant 1 : index
    %c0_43 = arith.constant 0 : index
    %c0_44 = arith.constant 0 : index
    %78 = vector.load %arg2[%c1_42, %c0_43, %c0_44] : memref<3x8x72xf32, #tpu.memory_space<vmem>>, vector<1x8x72xf32>
    %79 = vector.shape_cast %78 : vector<1x8x72xf32> to vector<8x72xf32>
    %cst_45 = arith.constant dense<0.000000e+00> : vector<8x256xf32>
    %80 = tpu.matmul %79, %77, %cst_45 {dimension_numbers = #tpu.dot_dimension_numbers<[1], [0], [0], [1], [0, 0, 1, 1], [], []>} : vector<8x72xf32>, vector<72x256xf32>, vector<8x256xf32> -> vector<8x256xf32>
    %81 = arith.addf %44, %80 : vector<8x256xf32>
    %c201_i32 = arith.constant 201 : i32
    %82 = tpu.dynamic_rotate %1 by %c201_i32 dim 1 : vector<8x256xf32>, i32 -> vector<8x256xf32>
    %c18 = arith.constant 18 : index
    %c0_46 = arith.constant 0 : index
    %c0_47 = arith.constant 0 : index
    %83 = vector.load %arg6[%c18, %c0_46, %c0_47] : memref<27x8x256xf32, #tpu.memory_space<vmem>>, vector<1x8x256xf32>
    %84 = vector.shape_cast %83 : vector<1x8x256xf32> to vector<8x256xf32>
    %85 = arith.mulf %82, %84 : vector<8x256xf32>
    %c200_i32 = arith.constant 200 : i32
    %86 = tpu.dynamic_rotate %1 by %c200_i32 dim 1 : vector<8x256xf32>, i32 -> vector<8x256xf32>
    %c19 = arith.constant 19 : index
    %c0_48 = arith.constant 0 : index
    %c0_49 = arith.constant 0 : index
    %87 = vector.load %arg6[%c19, %c0_48, %c0_49] : memref<27x8x256xf32, #tpu.memory_space<vmem>>, vector<1x8x256xf32>
    %88 = vector.shape_cast %87 : vector<1x8x256xf32> to vector<8x256xf32>
    %89 = arith.mulf %86, %88 : vector<8x256xf32>
    %c199_i32 = arith.constant 199 : i32
    %90 = tpu.dynamic_rotate %1 by %c199_i32 dim 1 : vector<8x256xf32>, i32 -> vector<8x256xf32>
    %c20 = arith.constant 20 : index
    %c0_50 = arith.constant 0 : index
    %c0_51 = arith.constant 0 : index
    %91 = vector.load %arg6[%c20, %c0_50, %c0_51] : memref<27x8x256xf32, #tpu.memory_space<vmem>>, vector<1x8x256xf32>
    %92 = vector.shape_cast %91 : vector<1x8x256xf32> to vector<8x256xf32>
    %93 = arith.mulf %90, %92 : vector<8x256xf32>
    %c193_i32 = arith.constant 193 : i32
    %94 = tpu.dynamic_rotate %1 by %c193_i32 dim 1 : vector<8x256xf32>, i32 -> vector<8x256xf32>
    %c21 = arith.constant 21 : index
    %c0_52 = arith.constant 0 : index
    %c0_53 = arith.constant 0 : index
    %95 = vector.load %arg6[%c21, %c0_52, %c0_53] : memref<27x8x256xf32, #tpu.memory_space<vmem>>, vector<1x8x256xf32>
    %96 = vector.shape_cast %95 : vector<1x8x256xf32> to vector<8x256xf32>
    %97 = arith.mulf %94, %96 : vector<8x256xf32>
    %c192_i32 = arith.constant 192 : i32
    %98 = tpu.dynamic_rotate %1 by %c192_i32 dim 1 : vector<8x256xf32>, i32 -> vector<8x256xf32>
    %c22 = arith.constant 22 : index
    %c0_54 = arith.constant 0 : index
    %c0_55 = arith.constant 0 : index
    %99 = vector.load %arg6[%c22, %c0_54, %c0_55] : memref<27x8x256xf32, #tpu.memory_space<vmem>>, vector<1x8x256xf32>
    %100 = vector.shape_cast %99 : vector<1x8x256xf32> to vector<8x256xf32>
    %101 = arith.mulf %98, %100 : vector<8x256xf32>
    %c191_i32 = arith.constant 191 : i32
    %102 = tpu.dynamic_rotate %1 by %c191_i32 dim 1 : vector<8x256xf32>, i32 -> vector<8x256xf32>
    %c23 = arith.constant 23 : index
    %c0_56 = arith.constant 0 : index
    %c0_57 = arith.constant 0 : index
    %103 = vector.load %arg6[%c23, %c0_56, %c0_57] : memref<27x8x256xf32, #tpu.memory_space<vmem>>, vector<1x8x256xf32>
    %104 = vector.shape_cast %103 : vector<1x8x256xf32> to vector<8x256xf32>
    %105 = arith.mulf %102, %104 : vector<8x256xf32>
    %c185_i32 = arith.constant 185 : i32
    %106 = tpu.dynamic_rotate %1 by %c185_i32 dim 1 : vector<8x256xf32>, i32 -> vector<8x256xf32>
    %c24 = arith.constant 24 : index
    %c0_58 = arith.constant 0 : index
    %c0_59 = arith.constant 0 : index
    %107 = vector.load %arg6[%c24, %c0_58, %c0_59] : memref<27x8x256xf32, #tpu.memory_space<vmem>>, vector<1x8x256xf32>
    %108 = vector.shape_cast %107 : vector<1x8x256xf32> to vector<8x256xf32>
    %109 = arith.mulf %106, %108 : vector<8x256xf32>
    %c184_i32 = arith.constant 184 : i32
    %110 = tpu.dynamic_rotate %1 by %c184_i32 dim 1 : vector<8x256xf32>, i32 -> vector<8x256xf32>
    %c25 = arith.constant 25 : index
    %c0_60 = arith.constant 0 : index
    %c0_61 = arith.constant 0 : index
    %111 = vector.load %arg6[%c25, %c0_60, %c0_61] : memref<27x8x256xf32, #tpu.memory_space<vmem>>, vector<1x8x256xf32>
    %112 = vector.shape_cast %111 : vector<1x8x256xf32> to vector<8x256xf32>
    %113 = arith.mulf %110, %112 : vector<8x256xf32>
    %c183_i32 = arith.constant 183 : i32
    %114 = tpu.dynamic_rotate %1 by %c183_i32 dim 1 : vector<8x256xf32>, i32 -> vector<8x256xf32>
    %c26 = arith.constant 26 : index
    %c0_62 = arith.constant 0 : index
    %c0_63 = arith.constant 0 : index
    %115 = vector.load %arg6[%c26, %c0_62, %c0_63] : memref<27x8x256xf32, #tpu.memory_space<vmem>>, vector<1x8x256xf32>
    %116 = vector.shape_cast %115 : vector<1x8x256xf32> to vector<8x256xf32>
    %117 = arith.mulf %114, %116 : vector<8x256xf32>
    %118 = tpu.concatenate %85, %89, %93, %97, %101, %105, %109, %113, %117 in 0 : vector<8x256xf32>, vector<8x256xf32>, vector<8x256xf32>, vector<8x256xf32>, vector<8x256xf32>, vector<8x256xf32>, vector<8x256xf32>, vector<8x256xf32>, vector<8x256xf32> -> vector<72x256xf32>
    %c2_64 = arith.constant 2 : index
    %c0_65 = arith.constant 0 : index
    %c0_66 = arith.constant 0 : index
    %119 = vector.load %arg2[%c2_64, %c0_65, %c0_66] : memref<3x8x72xf32, #tpu.memory_space<vmem>>, vector<1x8x72xf32>
    %120 = vector.shape_cast %119 : vector<1x8x72xf32> to vector<8x72xf32>
    %cst_67 = arith.constant dense<0.000000e+00> : vector<8x256xf32>
    %121 = tpu.matmul %120, %118, %cst_67 {dimension_numbers = #tpu.dot_dimension_numbers<[1], [0], [0], [1], [0, 0, 1, 1], [], []>} : vector<8x72xf32>, vector<72x256xf32>, vector<8x256xf32> -> vector<8x256xf32>
    %122 = arith.addf %81, %121 : vector<8x256xf32>
    %cst_68 = arith.constant 0.000000e+00 : f32
    %123 = vector.broadcast %cst_68 : f32 to vector<8x256xf32>
    %124 = arith.maximumf %122, %123 : vector<8x256xf32>
    %c0_69 = arith.constant 0 : index
    %c0_70 = arith.constant 0 : index
    %125 = vector.load %arg5[%c0_69, %c0_70] : memref<8x1xf32, #tpu.memory_space<vmem>>, vector<8x1xf32>
    %c73_i32_71 = arith.constant 73 : i32
    %126 = tpu.dynamic_rotate %124 by %c73_i32_71 dim 1 : vector<8x256xf32>, i32 -> vector<8x256xf32>
    %c0_72 = arith.constant 0 : index
    %c0_73 = arith.constant 0 : index
    %c0_74 = arith.constant 0 : index
    %127 = vector.load %arg6[%c0_72, %c0_73, %c0_74] : memref<27x8x256xf32, #tpu.memory_space<vmem>>, vector<1x8x256xf32>
    %128 = vector.shape_cast %127 : vector<1x8x256xf32> to vector<8x256xf32>
    %129 = arith.mulf %126, %128 : vector<8x256xf32>
    %c72_i32_75 = arith.constant 72 : i32
    %130 = tpu.dynamic_rotate %124 by %c72_i32_75 dim 1 : vector<8x256xf32>, i32 -> vector<8x256xf32>
    %c1_76 = arith.constant 1 : index
    %c0_77 = arith.constant 0 : index
    %c0_78 = arith.constant 0 : index
    %131 = vector.load %arg6[%c1_76, %c0_77, %c0_78] : memref<27x8x256xf32, #tpu.memory_space<vmem>>, vector<1x8x256xf32>
    %132 = vector.shape_cast %131 : vector<1x8x256xf32> to vector<8x256xf32>
    %133 = arith.mulf %130, %132 : vector<8x256xf32>
    %c71_i32_79 = arith.constant 71 : i32
    %134 = tpu.dynamic_rotate %124 by %c71_i32_79 dim 1 : vector<8x256xf32>, i32 -> vector<8x256xf32>
    %c2_80 = arith.constant 2 : index
    %c0_81 = arith.constant 0 : index
    %c0_82 = arith.constant 0 : index
    %135 = vector.load %arg6[%c2_80, %c0_81, %c0_82] : memref<27x8x256xf32, #tpu.memory_space<vmem>>, vector<1x8x256xf32>
    %136 = vector.shape_cast %135 : vector<1x8x256xf32> to vector<8x256xf32>
    %137 = arith.mulf %134, %136 : vector<8x256xf32>
    %c65_i32_83 = arith.constant 65 : i32
    %138 = tpu.dynamic_rotate %124 by %c65_i32_83 dim 1 : vector<8x256xf32>, i32 -> vector<8x256xf32>
    %c3_84 = arith.constant 3 : index
    %c0_85 = arith.constant 0 : index
    %c0_86 = arith.constant 0 : index
    %139 = vector.load %arg6[%c3_84, %c0_85, %c0_86] : memref<27x8x256xf32, #tpu.memory_space<vmem>>, vector<1x8x256xf32>
    %140 = vector.shape_cast %139 : vector<1x8x256xf32> to vector<8x256xf32>
    %141 = arith.mulf %138, %140 : vector<8x256xf32>
    %c64_i32_87 = arith.constant 64 : i32
    %142 = tpu.dynamic_rotate %124 by %c64_i32_87 dim 1 : vector<8x256xf32>, i32 -> vector<8x256xf32>
    %c4_88 = arith.constant 4 : index
    %c0_89 = arith.constant 0 : index
    %c0_90 = arith.constant 0 : index
    %143 = vector.load %arg6[%c4_88, %c0_89, %c0_90] : memref<27x8x256xf32, #tpu.memory_space<vmem>>, vector<1x8x256xf32>
    %144 = vector.shape_cast %143 : vector<1x8x256xf32> to vector<8x256xf32>
    %145 = arith.mulf %142, %144 : vector<8x256xf32>
    %c63_i32_91 = arith.constant 63 : i32
    %146 = tpu.dynamic_rotate %124 by %c63_i32_91 dim 1 : vector<8x256xf32>, i32 -> vector<8x256xf32>
    %c5_92 = arith.constant 5 : index
    %c0_93 = arith.constant 0 : index
    %c0_94 = arith.constant 0 : index
    %147 = vector.load %arg6[%c5_92, %c0_93, %c0_94] : memref<27x8x256xf32, #tpu.memory_space<vmem>>, vector<1x8x256xf32>
    %148 = vector.shape_cast %147 : vector<1x8x256xf32> to vector<8x256xf32>
    %149 = arith.mulf %146, %148 : vector<8x256xf32>
    %c57_i32_95 = arith.constant 57 : i32
    %150 = tpu.dynamic_rotate %124 by %c57_i32_95 dim 1 : vector<8x256xf32>, i32 -> vector<8x256xf32>
    %c6_96 = arith.constant 6 : index
    %c0_97 = arith.constant 0 : index
    %c0_98 = arith.constant 0 : index
    %151 = vector.load %arg6[%c6_96, %c0_97, %c0_98] : memref<27x8x256xf32, #tpu.memory_space<vmem>>, vector<1x8x256xf32>
    %152 = vector.shape_cast %151 : vector<1x8x256xf32> to vector<8x256xf32>
    %153 = arith.mulf %150, %152 : vector<8x256xf32>
    %c56_i32_99 = arith.constant 56 : i32
    %154 = tpu.dynamic_rotate %124 by %c56_i32_99 dim 1 : vector<8x256xf32>, i32 -> vector<8x256xf32>
    %c7_100 = arith.constant 7 : index
    %c0_101 = arith.constant 0 : index
    %c0_102 = arith.constant 0 : index
    %155 = vector.load %arg6[%c7_100, %c0_101, %c0_102] : memref<27x8x256xf32, #tpu.memory_space<vmem>>, vector<1x8x256xf32>
    %156 = vector.shape_cast %155 : vector<1x8x256xf32> to vector<8x256xf32>
    %157 = arith.mulf %154, %156 : vector<8x256xf32>
    %c55_i32_103 = arith.constant 55 : i32
    %158 = tpu.dynamic_rotate %124 by %c55_i32_103 dim 1 : vector<8x256xf32>, i32 -> vector<8x256xf32>
    %c8_104 = arith.constant 8 : index
    %c0_105 = arith.constant 0 : index
    %c0_106 = arith.constant 0 : index
    %159 = vector.load %arg6[%c8_104, %c0_105, %c0_106] : memref<27x8x256xf32, #tpu.memory_space<vmem>>, vector<1x8x256xf32>
    %160 = vector.shape_cast %159 : vector<1x8x256xf32> to vector<8x256xf32>
    %161 = arith.mulf %158, %160 : vector<8x256xf32>
    %162 = tpu.concatenate %129, %133, %137, %141, %145, %149, %153, %157, %161 in 0 : vector<8x256xf32>, vector<8x256xf32>, vector<8x256xf32>, vector<8x256xf32>, vector<8x256xf32>, vector<8x256xf32>, vector<8x256xf32>, vector<8x256xf32>, vector<8x256xf32> -> vector<72x256xf32>
    %c0_107 = arith.constant 0 : index
    %c0_108 = arith.constant 0 : index
    %c0_109 = arith.constant 0 : index
    %163 = vector.load %arg4[%c0_107, %c0_108, %c0_109] : memref<3x8x72xf32, #tpu.memory_space<vmem>>, vector<1x8x72xf32>
    %164 = vector.shape_cast %163 : vector<1x8x72xf32> to vector<8x72xf32>
    %cst_110 = arith.constant dense<0.000000e+00> : vector<8x256xf32>
    %165 = tpu.matmul %164, %162, %cst_110 {dimension_numbers = #tpu.dot_dimension_numbers<[1], [0], [0], [1], [0, 0, 1, 1], [], []>} : vector<8x72xf32>, vector<72x256xf32>, vector<8x256xf32> -> vector<8x256xf32>
    %166 = vector.broadcast %125 : vector<8x1xf32> to vector<8x256xf32>
    %167 = arith.addf %166, %165 : vector<8x256xf32>
    %c9_i32_111 = arith.constant 9 : i32
    %168 = tpu.dynamic_rotate %124 by %c9_i32_111 dim 1 : vector<8x256xf32>, i32 -> vector<8x256xf32>
    %c9_112 = arith.constant 9 : index
    %c0_113 = arith.constant 0 : index
    %c0_114 = arith.constant 0 : index
    %169 = vector.load %arg6[%c9_112, %c0_113, %c0_114] : memref<27x8x256xf32, #tpu.memory_space<vmem>>, vector<1x8x256xf32>
    %170 = vector.shape_cast %169 : vector<1x8x256xf32> to vector<8x256xf32>
    %171 = arith.mulf %168, %170 : vector<8x256xf32>
    %c8_i32_115 = arith.constant 8 : i32
    %172 = tpu.dynamic_rotate %124 by %c8_i32_115 dim 1 : vector<8x256xf32>, i32 -> vector<8x256xf32>
    %c10_116 = arith.constant 10 : index
    %c0_117 = arith.constant 0 : index
    %c0_118 = arith.constant 0 : index
    %173 = vector.load %arg6[%c10_116, %c0_117, %c0_118] : memref<27x8x256xf32, #tpu.memory_space<vmem>>, vector<1x8x256xf32>
    %174 = vector.shape_cast %173 : vector<1x8x256xf32> to vector<8x256xf32>
    %175 = arith.mulf %172, %174 : vector<8x256xf32>
    %c7_i32_119 = arith.constant 7 : i32
    %176 = tpu.dynamic_rotate %124 by %c7_i32_119 dim 1 : vector<8x256xf32>, i32 -> vector<8x256xf32>
    %c11_120 = arith.constant 11 : index
    %c0_121 = arith.constant 0 : index
    %c0_122 = arith.constant 0 : index
    %177 = vector.load %arg6[%c11_120, %c0_121, %c0_122] : memref<27x8x256xf32, #tpu.memory_space<vmem>>, vector<1x8x256xf32>
    %178 = vector.shape_cast %177 : vector<1x8x256xf32> to vector<8x256xf32>
    %179 = arith.mulf %176, %178 : vector<8x256xf32>
    %c1_i32_123 = arith.constant 1 : i32
    %180 = tpu.dynamic_rotate %124 by %c1_i32_123 dim 1 : vector<8x256xf32>, i32 -> vector<8x256xf32>
    %c12_124 = arith.constant 12 : index
    %c0_125 = arith.constant 0 : index
    %c0_126 = arith.constant 0 : index
    %181 = vector.load %arg6[%c12_124, %c0_125, %c0_126] : memref<27x8x256xf32, #tpu.memory_space<vmem>>, vector<1x8x256xf32>
    %182 = vector.shape_cast %181 : vector<1x8x256xf32> to vector<8x256xf32>
    %183 = arith.mulf %180, %182 : vector<8x256xf32>
    %c255_i32_127 = arith.constant 255 : i32
    %184 = tpu.dynamic_rotate %124 by %c255_i32_127 dim 1 : vector<8x256xf32>, i32 -> vector<8x256xf32>
    %c14_128 = arith.constant 14 : index
    %c0_129 = arith.constant 0 : index
    %c0_130 = arith.constant 0 : index
    %185 = vector.load %arg6[%c14_128, %c0_129, %c0_130] : memref<27x8x256xf32, #tpu.memory_space<vmem>>, vector<1x8x256xf32>
    %186 = vector.shape_cast %185 : vector<1x8x256xf32> to vector<8x256xf32>
    %187 = arith.mulf %184, %186 : vector<8x256xf32>
    %c249_i32_131 = arith.constant 249 : i32
    %188 = tpu.dynamic_rotate %124 by %c249_i32_131 dim 1 : vector<8x256xf32>, i32 -> vector<8x256xf32>
    %c15_132 = arith.constant 15 : index
    %c0_133 = arith.constant 0 : index
    %c0_134 = arith.constant 0 : index
    %189 = vector.load %arg6[%c15_132, %c0_133, %c0_134] : memref<27x8x256xf32, #tpu.memory_space<vmem>>, vector<1x8x256xf32>
    %190 = vector.shape_cast %189 : vector<1x8x256xf32> to vector<8x256xf32>
    %191 = arith.mulf %188, %190 : vector<8x256xf32>
    %c248_i32_135 = arith.constant 248 : i32
    %192 = tpu.dynamic_rotate %124 by %c248_i32_135 dim 1 : vector<8x256xf32>, i32 -> vector<8x256xf32>
    %c16_136 = arith.constant 16 : index
    %c0_137 = arith.constant 0 : index
    %c0_138 = arith.constant 0 : index
    %193 = vector.load %arg6[%c16_136, %c0_137, %c0_138] : memref<27x8x256xf32, #tpu.memory_space<vmem>>, vector<1x8x256xf32>
    %194 = vector.shape_cast %193 : vector<1x8x256xf32> to vector<8x256xf32>
    %195 = arith.mulf %192, %194 : vector<8x256xf32>
    %c247_i32_139 = arith.constant 247 : i32
    %196 = tpu.dynamic_rotate %124 by %c247_i32_139 dim 1 : vector<8x256xf32>, i32 -> vector<8x256xf32>
    %c17_140 = arith.constant 17 : index
    %c0_141 = arith.constant 0 : index
    %c0_142 = arith.constant 0 : index
    %197 = vector.load %arg6[%c17_140, %c0_141, %c0_142] : memref<27x8x256xf32, #tpu.memory_space<vmem>>, vector<1x8x256xf32>
    %198 = vector.shape_cast %197 : vector<1x8x256xf32> to vector<8x256xf32>
    %199 = arith.mulf %196, %198 : vector<8x256xf32>
    %200 = tpu.concatenate %171, %175, %179, %183, %124, %187, %191, %195, %199 in 0 : vector<8x256xf32>, vector<8x256xf32>, vector<8x256xf32>, vector<8x256xf32>, vector<8x256xf32>, vector<8x256xf32>, vector<8x256xf32>, vector<8x256xf32>, vector<8x256xf32> -> vector<72x256xf32>
    %c1_143 = arith.constant 1 : index
    %c0_144 = arith.constant 0 : index
    %c0_145 = arith.constant 0 : index
    %201 = vector.load %arg4[%c1_143, %c0_144, %c0_145] : memref<3x8x72xf32, #tpu.memory_space<vmem>>, vector<1x8x72xf32>
    %202 = vector.shape_cast %201 : vector<1x8x72xf32> to vector<8x72xf32>
    %cst_146 = arith.constant dense<0.000000e+00> : vector<8x256xf32>
    %203 = tpu.matmul %202, %200, %cst_146 {dimension_numbers = #tpu.dot_dimension_numbers<[1], [0], [0], [1], [0, 0, 1, 1], [], []>} : vector<8x72xf32>, vector<72x256xf32>, vector<8x256xf32> -> vector<8x256xf32>
    %204 = arith.addf %167, %203 : vector<8x256xf32>
    %c201_i32_147 = arith.constant 201 : i32
    %205 = tpu.dynamic_rotate %124 by %c201_i32_147 dim 1 : vector<8x256xf32>, i32 -> vector<8x256xf32>
    %c18_148 = arith.constant 18 : index
    %c0_149 = arith.constant 0 : index
    %c0_150 = arith.constant 0 : index
    %206 = vector.load %arg6[%c18_148, %c0_149, %c0_150] : memref<27x8x256xf32, #tpu.memory_space<vmem>>, vector<1x8x256xf32>
    %207 = vector.shape_cast %206 : vector<1x8x256xf32> to vector<8x256xf32>
    %208 = arith.mulf %205, %207 : vector<8x256xf32>
    %c200_i32_151 = arith.constant 200 : i32
    %209 = tpu.dynamic_rotate %124 by %c200_i32_151 dim 1 : vector<8x256xf32>, i32 -> vector<8x256xf32>
    %c19_152 = arith.constant 19 : index
    %c0_153 = arith.constant 0 : index
    %c0_154 = arith.constant 0 : index
    %210 = vector.load %arg6[%c19_152, %c0_153, %c0_154] : memref<27x8x256xf32, #tpu.memory_space<vmem>>, vector<1x8x256xf32>
    %211 = vector.shape_cast %210 : vector<1x8x256xf32> to vector<8x256xf32>
    %212 = arith.mulf %209, %211 : vector<8x256xf32>
    %c199_i32_155 = arith.constant 199 : i32
    %213 = tpu.dynamic_rotate %124 by %c199_i32_155 dim 1 : vector<8x256xf32>, i32 -> vector<8x256xf32>
    %c20_156 = arith.constant 20 : index
    %c0_157 = arith.constant 0 : index
    %c0_158 = arith.constant 0 : index
    %214 = vector.load %arg6[%c20_156, %c0_157, %c0_158] : memref<27x8x256xf32, #tpu.memory_space<vmem>>, vector<1x8x256xf32>
    %215 = vector.shape_cast %214 : vector<1x8x256xf32> to vector<8x256xf32>
    %216 = arith.mulf %213, %215 : vector<8x256xf32>
    %c193_i32_159 = arith.constant 193 : i32
    %217 = tpu.dynamic_rotate %124 by %c193_i32_159 dim 1 : vector<8x256xf32>, i32 -> vector<8x256xf32>
    %c21_160 = arith.constant 21 : index
    %c0_161 = arith.constant 0 : index
    %c0_162 = arith.constant 0 : index
    %218 = vector.load %arg6[%c21_160, %c0_161, %c0_162] : memref<27x8x256xf32, #tpu.memory_space<vmem>>, vector<1x8x256xf32>
    %219 = vector.shape_cast %218 : vector<1x8x256xf32> to vector<8x256xf32>
    %220 = arith.mulf %217, %219 : vector<8x256xf32>
    %c192_i32_163 = arith.constant 192 : i32
    %221 = tpu.dynamic_rotate %124 by %c192_i32_163 dim 1 : vector<8x256xf32>, i32 -> vector<8x256xf32>
    %c22_164 = arith.constant 22 : index
    %c0_165 = arith.constant 0 : index
    %c0_166 = arith.constant 0 : index
    %222 = vector.load %arg6[%c22_164, %c0_165, %c0_166] : memref<27x8x256xf32, #tpu.memory_space<vmem>>, vector<1x8x256xf32>
    %223 = vector.shape_cast %222 : vector<1x8x256xf32> to vector<8x256xf32>
    %224 = arith.mulf %221, %223 : vector<8x256xf32>
    %c191_i32_167 = arith.constant 191 : i32
    %225 = tpu.dynamic_rotate %124 by %c191_i32_167 dim 1 : vector<8x256xf32>, i32 -> vector<8x256xf32>
    %c23_168 = arith.constant 23 : index
    %c0_169 = arith.constant 0 : index
    %c0_170 = arith.constant 0 : index
    %226 = vector.load %arg6[%c23_168, %c0_169, %c0_170] : memref<27x8x256xf32, #tpu.memory_space<vmem>>, vector<1x8x256xf32>
    %227 = vector.shape_cast %226 : vector<1x8x256xf32> to vector<8x256xf32>
    %228 = arith.mulf %225, %227 : vector<8x256xf32>
    %c185_i32_171 = arith.constant 185 : i32
    %229 = tpu.dynamic_rotate %124 by %c185_i32_171 dim 1 : vector<8x256xf32>, i32 -> vector<8x256xf32>
    %c24_172 = arith.constant 24 : index
    %c0_173 = arith.constant 0 : index
    %c0_174 = arith.constant 0 : index
    %230 = vector.load %arg6[%c24_172, %c0_173, %c0_174] : memref<27x8x256xf32, #tpu.memory_space<vmem>>, vector<1x8x256xf32>
    %231 = vector.shape_cast %230 : vector<1x8x256xf32> to vector<8x256xf32>
    %232 = arith.mulf %229, %231 : vector<8x256xf32>
    %c184_i32_175 = arith.constant 184 : i32
    %233 = tpu.dynamic_rotate %124 by %c184_i32_175 dim 1 : vector<8x256xf32>, i32 -> vector<8x256xf32>
    %c25_176 = arith.constant 25 : index
    %c0_177 = arith.constant 0 : index
    %c0_178 = arith.constant 0 : index
    %234 = vector.load %arg6[%c25_176, %c0_177, %c0_178] : memref<27x8x256xf32, #tpu.memory_space<vmem>>, vector<1x8x256xf32>
    %235 = vector.shape_cast %234 : vector<1x8x256xf32> to vector<8x256xf32>
    %236 = arith.mulf %233, %235 : vector<8x256xf32>
    %c183_i32_179 = arith.constant 183 : i32
    %237 = tpu.dynamic_rotate %124 by %c183_i32_179 dim 1 : vector<8x256xf32>, i32 -> vector<8x256xf32>
    %c26_180 = arith.constant 26 : index
    %c0_181 = arith.constant 0 : index
    %c0_182 = arith.constant 0 : index
    %238 = vector.load %arg6[%c26_180, %c0_181, %c0_182] : memref<27x8x256xf32, #tpu.memory_space<vmem>>, vector<1x8x256xf32>
    %239 = vector.shape_cast %238 : vector<1x8x256xf32> to vector<8x256xf32>
    %240 = arith.mulf %237, %239 : vector<8x256xf32>
    %241 = tpu.concatenate %208, %212, %216, %220, %224, %228, %232, %236, %240 in 0 : vector<8x256xf32>, vector<8x256xf32>, vector<8x256xf32>, vector<8x256xf32>, vector<8x256xf32>, vector<8x256xf32>, vector<8x256xf32>, vector<8x256xf32>, vector<8x256xf32> -> vector<72x256xf32>
    %c2_183 = arith.constant 2 : index
    %c0_184 = arith.constant 0 : index
    %c0_185 = arith.constant 0 : index
    %242 = vector.load %arg4[%c2_183, %c0_184, %c0_185] : memref<3x8x72xf32, #tpu.memory_space<vmem>>, vector<1x8x72xf32>
    %243 = vector.shape_cast %242 : vector<1x8x72xf32> to vector<8x72xf32>
    %cst_186 = arith.constant dense<0.000000e+00> : vector<8x256xf32>
    %244 = tpu.matmul %243, %241, %cst_186 {dimension_numbers = #tpu.dot_dimension_numbers<[1], [0], [0], [1], [0, 0, 1, 1], [], []>} : vector<8x72xf32>, vector<72x256xf32>, vector<8x256xf32> -> vector<8x256xf32>
    %245 = arith.addf %204, %244 : vector<8x256xf32>
    %246 = arith.addf %245, %1 : vector<8x256xf32>
    %c0_187 = arith.constant 0 : index
    %c0_188 = arith.constant 0 : index
    %c0_189 = arith.constant 0 : index
    %247 = vector.load %arg7[%c0_187, %c0_188, %c0_189] : memref<1x8x256xf32, #tpu.memory_space<vmem>>, vector<1x8x256xf32>
    %248 = vector.shape_cast %247 : vector<1x8x256xf32> to vector<8x256xf32>
    %249 = vector.shape_cast %246 : vector<8x256xf32> to vector<1x8x256xf32>
    tpu.vector_store %arg7[%c0_187, %c0_188, %c0_189], %249 {strides = array<i32>} : memref<1x8x256xf32, #tpu.memory_space<vmem>>, vector<1x8x256xf32>,
    return
  }
  func.func @transform_0(%arg0: i32) -> (i32, i32, i32) {
    %c0_i32 = arith.constant 0 : i32
    %c0_i32_0 = arith.constant 0 : i32
    %c0_i32_1 = arith.constant 0 : i32
    return %arg0, %c0_i32, %c0_i32_0 : i32, i32, i32
  }
  func.func @transform_1(%arg0: i32) -> (i32, i32, i32) {
    %c0_i32 = arith.constant 0 : i32
    %c0_i32_0 = arith.constant 0 : i32
    %c0_i32_1 = arith.constant 0 : i32
    %c0_i32_2 = arith.constant 0 : i32
    return %c0_i32, %c0_i32_0, %c0_i32_1 : i32, i32, i32
  }
  func.func @transform_2(%arg0: i32) -> (i32, i32) {
    %c0_i32 = arith.constant 0 : i32
    %c0_i32_0 = arith.constant 0 : i32
    %c0_i32_1 = arith.constant 0 : i32
    return %c0_i32, %c0_i32_0 : i32, i32
  }
  func.func @transform_3(%arg0: i32) -> (i32, i32, i32) {
    %c0_i32 = arith.constant 0 : i32
    %c0_i32_0 = arith.constant 0 : i32
    %c0_i32_1 = arith.constant 0 : i32
    %c0_i32_2 = arith.constant 0 : i32
    return %c0_i32, %c0_i32_0, %c0_i32_1 : i32, i32, i32
  }
  func.func @transform_4(%arg0: i32) -> (i32, i32) {
    %c0_i32 = arith.constant 0 : i32
    %c0_i32_0 = arith.constant 0 : i32
    %c0_i32_1 = arith.constant 0 : i32
    return %c0_i32, %c0_i32_0 : i32, i32
  }
  func.func @transform_5(%arg0: i32) -> (i32, i32, i32) {
    %c0_i32 = arith.constant 0 : i32
    %c0_i32_0 = arith.constant 0 : i32
    %c0_i32_1 = arith.constant 0 : i32
    %c0_i32_2 = arith.constant 0 : i32
    return %c0_i32, %c0_i32_0, %c0_i32_1 : i32, i32, i32
  }
  func.func @transform_6(%arg0: i32) -> (i32, i32, i32) {
    %c0_i32 = arith.constant 0 : i32
    %c0_i32_0 = arith.constant 0 : i32
    %c0_i32_1 = arith.constant 0 : i32
    return %arg0, %c0_i32, %c0_i32_0 : i32, i32, i32
  }
}

</mosaic_0001>

<llo_original>
// kernel: basic_block_3d.1
$region0: #{basic_block_3d.1}
  #allocation0 [shape = 'u32[]', space=smem, size = 0x4, offset = 0x4, fixed_abs, tag = 'smem constant byte address 0x4 - core index']
  #allocation1 [shape = 'u32[144,128]{1,0:T(1,128)}', space=vmem, size = 0x12000, scoped, tag = 'internal scratch']
  %s0 = inlined_call_operand.hbm [shape: f32[2,8,256], index: 0, kind: input, shape index: {}]
  %s1 = inlined_call_operand.hbm [shape: f32[3,8,72], index: 1, kind: input, shape index: {}]
  %s2 = inlined_call_operand.hbm [shape: f32[8,1], index: 2, kind: input, shape index: {}]
  %s3 = inlined_call_operand.hbm [shape: f32[3,8,72], index: 3, kind: input, shape index: {}]
  %s4 = inlined_call_operand.hbm [shape: f32[8,1], index: 4, kind: input, shape index: {}]
  %s5 = inlined_call_operand.hbm [shape: f32[27,8,256], index: 5, kind: input, shape index: {}]
  %s6 = inlined_call_operand.hbm [shape: f32[2,8,256], index: 6, kind: output, shape index: {}]
  %s7 = sld [smem:[#allocation0]]
  $region81: #{basic_block_3d.1} parent=0
    _
  %s9 = ssub.s32 1, %s7
  %s10 = scalar_select 0, %s9, %s7
  $region1: #{basic_block_3d.1} parent=0
    #allocation2 [shape = 'u8[16384]{0}', space=vmem, size = 0x4000, scoped, tag = 'input window, operand 0']
    #allocation3 [shape = 's32[2]{0}', space=sflag, size = 0x8, scoped, tag = 'scoped memory for basic_block_3d.1']
    #allocation4 [shape = 's32[2]{0}', space=sflag, size = 0x8, scoped, tag = 'scoped memory for basic_block_3d.1']
    #allocation5 [shape = 'u8[12288]{0}', space=vmem, size = 0x3000, scoped, tag = 'input window, operand 1, single buffered']
    #allocation6 [shape = 's32[1]{0}', space=sflag, size = 0x4, scoped, tag = 'scoped memory for basic_block_3d.1']
    #allocation7 [shape = 'u8[4096]{0}', space=vmem, size = 0x1000, scoped, tag = 'input window, operand 2, single buffered']
    #allocation8 [shape = 'u8[12288]{0}', space=vmem, size = 0x3000, scoped, tag = 'input window, operand 3, single buffered']
    #allocation9 [shape = 's32[1]{0}', space=sflag, size = 0x4, scoped, tag = 'scoped memory for basic_block_3d.1']
    #allocation10 [shape = 'u8[4096]{0}', space=vmem, size = 0x1000, scoped, tag = 'input window, operand 4, single buffered']
    #allocation11 [shape = 'u8[221184]{0}', space=vmem, size = 0x36000, scoped, tag = 'input window, operand 5, single buffered']
    #allocation12 [shape = 's32[1]{0}', space=sflag, size = 0x4, scoped, tag = 'scoped memory for basic_block_3d.1']
    #allocation13 [shape = 'u8[16384]{0}', space=vmem, size = 0x4000, scoped, tag = 'output window, operand 0']
    %11 = vsyncpa [#allocation3], 0
    %s12 = scalar_lea.sflag [#allocation3], 1
    %13 = vsyncpa %s12, 0
    %14 = vsyncpa [#allocation6], 0
    %15 = vsyncpa [#allocation9], 0
    %16 = vsyncpa [#allocation12], 0
    %17 = vsyncpa [#allocation4], 0
    %s18 = scalar_lea.sflag [#allocation4], 1
    %19 = vsyncpa %s18, 0
    loop: start=0, step=1, limit=4
    $region2: #{basic_block_3d.1} parent=1 // loop_pre_header
      _
    $region3: #{basic_block_3d.1} parent=1 // loop_header
      %s21 = sphi 0, %s25
      %p22 = scmp.ge.s32.totalorder %s21, 4
      %s31 = sphi 0, %s33
      %s34 = sphi 0, %s31
      %s35 = sphi 0, %s34
      %s51 = sphi 0, %s35
      %s55 = sphi 0, %s55
      %s57 = sphi 0, %s55
      %s58 = sphi 0, %s57
      %s72 = sphi 0, %s58
      %s76 = sphi 0, %s76
      %s78 = sphi 0, %s76
      %s79 = sphi 0, %s78
      %s93 = sphi 0, %s79
      %s97 = sphi 0, %s97
      %s99 = sphi 0, %s97
      %s100 = sphi 0, %s99
      %s114 = sphi 0, %s100
      %s118 = sphi 0, %s118
      %s120 = sphi 0, %s118
      %s121 = sphi 0, %s120
      %s135 = sphi 0, %s121
      %s139 = sphi 0, %s139
      %s141 = sphi 0, %s139
      %s142 = sphi 0, %s141
      %s156 = sphi 0, %s142
      %s162 = sphi 0, %s164
      %s165 = sphi 0, %s162
      %s166 = sphi 0, %s165
      %s182 = sphi 0, %s166
    $region4: #{basic_block_3d.1} parent=1 // loop_header_branch
      %24 = sbr.rel (%p22) target = $region8
    $region5: #{basic_block_3d.1} parent=1 // loop_body
      %s26 = ssub.s32 %s21, 1
      %s27 = ssub.s32 %s21, 2
      %s28 = sadd.s32 %s21, 1
      %s29 = ssub.s32 %s21, %s28
      %p30 = scmp.eq.s32.totalorder %s29, 0
      %s32 = sadd.s32 %s31, 1
      %s33 = scalar_select %p30, %s31, %s32
      %p36 = pneg %p30
      %p37 = scmp.eq.s32.totalorder %s21, 1
      %p38 = por %p36, %p37
      %p39 = scmp.ne.s32.totalorder %s31, %s34
      %p40 = scmp.eq.s32.totalorder %s21, 0
      %p41 = por %p39, %p40
      %p42 = scmp.ne.s32.totalorder %s31, %s34
      %p43 = scmp.eq.s32.totalorder %s26, 1
      %p44 = por %p42, %p43
      %p45 = scmp.ne.s32.totalorder %s34, %s35
      %p46 = scmp.eq.s32.totalorder %s26, 0
      %p47 = por %p45, %p46
      %p48 = scmp.ne.s32.totalorder %s34, %s35
      %p49 = scmp.eq.s32.totalorder %s27, 1
      %p50 = por %p48, %p49
      %p52 = scmp.ne.s32.totalorder %s35, %s51
      %p53 = scmp.eq.s32.totalorder %s27, 0
      %p54 = por %p52, %p53
      %s56 = sadd.s32 %s55, 1
      %p59 = scmp.eq.s32.totalorder %s21, 1
      %p60 = scmp.ne.s32.totalorder %s55, %s57
      %p61 = scmp.eq.s32.totalorder %s21, 0
      %p62 = por %p60, %p61
      %p63 = scmp.ne.s32.totalorder %s55, %s57
      %p64 = scmp.eq.s32.totalorder %s26, 1
      %p65 = por %p63, %p64
      %p66 = scmp.ne.s32.totalorder %s57, %s58
      %p67 = scmp.eq.s32.totalorder %s26, 0
      %p68 = por %p66, %p67
      %p69 = scmp.ne.s32.totalorder %s57, %s58
      %p70 = scmp.eq.s32.totalorder %s27, 1
      %p71 = por %p69, %p70
      %p73 = scmp.ne.s32.totalorder %s58, %s72
      %p74 = scmp.eq.s32.totalorder %s27, 0
      %p75 = por %p73, %p74
      %s77 = sadd.s32 %s76, 1
      %p80 = scmp.eq.s32.totalorder %s21, 1
      %p81 = scmp.ne.s32.totalorder %s76, %s78
      %p82 = scmp.eq.s32.totalorder %s21, 0
      %p83 = por %p81, %p82
      %p84 = scmp.ne.s32.totalorder %s76, %s78
      %p85 = scmp.eq.s32.totalorder %s26, 1
      %p86 = por %p84, %p85
      %p87 = scmp.ne.s32.totalorder %s78, %s79
      %p88 = scmp.eq.s32.totalorder %s26, 0
      %p89 = por %p87, %p88
      %p90 = scmp.ne.s32.totalorder %s78, %s79
      %p91 = scmp.eq.s32.totalorder %s27, 1
      %p92 = por %p90, %p91
      %p94 = scmp.ne.s32.totalorder %s79, %s93
      %p95 = scmp.eq.s32.totalorder %s27, 0
      %p96 = por %p94, %p95
      %s98 = sadd.s32 %s97, 1
      %p101 = scmp.eq.s32.totalorder %s21, 1
      %p102 = scmp.ne.s32.totalorder %s97, %s99
      %p103 = scmp.eq.s32.totalorder %s21, 0
      %p104 = por %p102, %p103
      %p105 = scmp.ne.s32.totalorder %s97, %s99
      %p106 = scmp.eq.s32.totalorder %s26, 1
      %p107 = por %p105, %p106
      %p108 = scmp.ne.s32.totalorder %s99, %s100
      %p109 = scmp.eq.s32.totalorder %s26, 0
      %p110 = por %p108, %p109
      %p111 = scmp.ne.s32.totalorder %s99, %s100
      %p112 = scmp.eq.s32.totalorder %s27, 1
      %p113 = por %p111, %p112
      %p115 = scmp.ne.s32.totalorder %s100, %s114
      %p116 = scmp.eq.s32.totalorder %s27, 0
      %p117 = por %p115, %p116
      %s119 = sadd.s32 %s118, 1
      %p122 = scmp.eq.s32.totalorder %s21, 1
      %p123 = scmp.ne.s32.totalorder %s118, %s120
      %p124 = scmp.eq.s32.totalorder %s21, 0
      %p125 = por %p123, %p124
      %p126 = scmp.ne.s32.totalorder %s118, %s120
      %p127 = scmp.eq.s32.totalorder %s26, 1
      %p128 = por %p126, %p127
      %p129 = scmp.ne.s32.totalorder %s120, %s121
      %p130 = scmp.eq.s32.totalorder %s26, 0
      %p131 = por %p129, %p130
      %p132 = scmp.ne.s32.totalorder %s120, %s121
      %p133 = scmp.eq.s32.totalorder %s27, 1
      %p134 = por %p132, %p133
      %p136 = scmp.ne.s32.totalorder %s121, %s135
      %p137 = scmp.eq.s32.totalorder %s27, 0
      %p138 = por %p136, %p137
      %s140 = sadd.s32 %s139, 1
      %p143 = scmp.eq.s32.totalorder %s21, 1
      %p144 = scmp.ne.s32.totalorder %s139, %s141
      %p145 = scmp.eq.s32.totalorder %s21, 0
      %p146 = por %p144, %p145
      %p147 = scmp.ne.s32.totalorder %s139, %s141
      %p148 = scmp.eq.s32.totalorder %s26, 1
      %p149 = por %p147, %p148
      %p150 = scmp.ne.s32.totalorder %s141, %s142
      %p151 = scmp.eq.s32.totalorder %s26, 0
      %p152 = por %p150, %p151
      %p153 = scmp.ne.s32.totalorder %s141, %s142
      %p154 = scmp.eq.s32.totalorder %s27, 1
      %p155 = por %p153, %p154
      %p157 = scmp.ne.s32.totalorder %s142, %s156
      %p158 = scmp.eq.s32.totalorder %s27, 0
      %p159 = por %p157, %p158
      %s160 = ssub.s32 %s21, %s28
      %p161 = scmp.eq.s32.totalorder %s160, 0
      %s163 = sadd.s32 %s162, 1
      %s164 = scalar_select %p161, %s162, %s163
      %p167 = pneg %p161
      %p168 = scmp.eq.s32.totalorder %s21, 1
      %p169 = por %p167, %p168
      %p170 = scmp.ne.s32.totalorder %s162, %s165
      %p171 = scmp.eq.s32.totalorder %s21, 0
      %p172 = por %p170, %p171
      %p173 = scmp.ne.s32.totalorder %s162, %s165
      %p174 = scmp.eq.s32.totalorder %s26, 1
      %p175 = por %p173, %p174
      %p176 = scmp.ne.s32.totalorder %s165, %s166
      %p177 = scmp.eq.s32.totalorder %s26, 0
      %p178 = por %p176, %p177
      %p179 = scmp.ne.s32.totalorder %s165, %s166
      %p180 = scmp.eq.s32.totalorder %s27, 1
      %p181 = por %p179, %p180
      %p183 = scmp.ne.s32.totalorder %s166, %s182
      %p184 = scmp.eq.s32.totalorder %s27, 0
      %p185 = por %p183, %p184
      %p186 = scmp.le.s32.totalorder 1, %s21
      %p187 = scmp.lt.s32.totalorder %s21, 3
      %p188 = pnand %p186, %p187
      %p189 = pneg %p188
      // Predicated region
      $region9: #{basic_block_3d.1} parent=5 // pred_check
        _
      $region10: #{basic_block_3d.1} parent=5 // pred_check_branch
        %191 = sbr.rel (%p188) target = $region12
      $region11: #{basic_block_3d.1} parent=5 // pred_region
        %s192 = ssub.s32 %s21, 1
        // Predicated region
        $region13: #{basic_block_3d.1} parent=11 // pred_check
          %p193 = pneg %p68
        $region14: #{basic_block_3d.1} parent=11 // pred_check_branch
          %195 = sbr.rel (%p193) target = $region16
        $region15: #{basic_block_3d.1} parent=11 // pred_region
          %s197 = ssub.s32 384, 384
          %198 = vsyncadd [#allocation6], %s197
          %s199 = sshll.u32 [#allocation5], 4
          %s200 = int_to_ptr.vmem [resolvable:$true] %s199
          %205 = dma.hbm_to_vmem [thread:$0]  %s1, 384, %s200, [#allocation6], 128, 128, 8
        $region16: #{basic_block_3d.1} parent=11 // pred_fallthru
          _
        // Predicated region
        $region17: #{basic_block_3d.1} parent=11 // pred_check
          %p206 = pneg %p89
        $region18: #{basic_block_3d.1} parent=11 // pred_check_branch
          %208 = sbr.rel (%p206) target = $region20
        $region19: #{basic_block_3d.1} parent=11 // pred_region
          %s210 = ssub.s32 128, 128
          %211 = vsyncadd [#allocation6], %s210
          %s213 = sshll.u32 [#allocation7], 4
          %s214 = int_to_ptr.vmem [resolvable:$true] %s213
          %216 = dma.hbm_to_vmem [thread:$0]  %s2, 128, %s214, [#allocation6]
        $region20: #{basic_block_3d.1} parent=11 // pred_fallthru
          _
        // Predicated region
        $region21: #{basic_block_3d.1} parent=11 // pred_check
          %p217 = pneg %p110
        $region22: #{basic_block_3d.1} parent=11 // pred_check_branch
          %219 = sbr.rel (%p217) target = $region24
        $region23: #{basic_block_3d.1} parent=11 // pred_region
          %s221 = ssub.s32 384, 384
          %222 = vsyncadd [#allocation9], %s221
          %s223 = sshll.u32 [#allocation8], 4
          %s224 = int_to_ptr.vmem [resolvable:$true] %s223
          %229 = dma.hbm_to_vmem [thread:$0]  %s3, 384, %s224, [#allocation9], 128, 128, 8
        $region24: #{basic_block_3d.1} parent=11 // pred_fallthru
          _
        // Predicated region
        $region25: #{basic_block_3d.1} parent=11 // pred_check
          %p230 = pneg %p131
        $region26: #{basic_block_3d.1} parent=11 // pred_check_branch
          %232 = sbr.rel (%p230) target = $region28
        $region27: #{basic_block_3d.1} parent=11 // pred_region
          %s234 = ssub.s32 128, 128
          %235 = vsyncadd [#allocation9], %s234
          %s237 = sshll.u32 [#allocation10], 4
          %s238 = int_to_ptr.vmem [resolvable:$true] %s237
          %240 = dma.hbm_to_vmem [thread:$0]  %s4, 128, %s238, [#allocation9]
        $region28: #{basic_block_3d.1} parent=11 // pred_fallthru
          _
        // Predicated region
        $region29: #{basic_block_3d.1} parent=11 // pred_check
          %p241 = pneg %p152
        $region30: #{basic_block_3d.1} parent=11 // pred_check_branch
          %243 = sbr.rel (%p241) target = $region32
        $region31: #{basic_block_3d.1} parent=11 // pred_region
          %s245 = ssub.s32 6912, 6912
          %246 = vsyncadd [#allocation12], %s245
          %s247 = sshll.u32 [#allocation11], 4
          %s248 = int_to_ptr.vmem [resolvable:$true] %s247
          %253 = dma.hbm_to_vmem [thread:$0]  %s5, 6912, %s248, [#allocation12], 256, 256, 16
        $region32: #{basic_block_3d.1} parent=11 // pred_fallthru
          _
      $region12: #{basic_block_3d.1} parent=5 // pred_fallthru
        _
      %p254 = scmp.lt.s32.totalorder %s21, 2
      // Predicated region
      $region33: #{basic_block_3d.1} parent=5 // pred_check
        %p255 = pneg %p254
      $region34: #{basic_block_3d.1} parent=5 // pred_check_branch
        %257 = sbr.rel (%p255) target = $region36
      $region35: #{basic_block_3d.1} parent=5 // pred_region
        // Predicated region
        $region37: #{basic_block_3d.1} parent=35 // pred_check
          %p258 = pneg %p41
        $region38: #{basic_block_3d.1} parent=35 // pred_check_branch
          %260 = sbr.rel (%p258) target = $region40
        $region39: #{basic_block_3d.1} parent=35 // pred_region
          %s261 = sand.u32 %s31, 1
          %s262 = scalar_lea.sflag [#allocation3], %s261
          %s263 = sand.u32 %s31, 1
          %s264 = smul.addr %s263, 16
          %s265 = scalar_lea.vmem [#allocation2], %s264
          %s267 = ssub.s32 256, 256
          %268 = vsyncadd %s262, %s267
          %s269 = smul.addr %s21, 2
          %s270 = smul.addr %s269, 128
          %s271 = scalar_lea.hbm %s0, %s270
          %s273 = sshll.u32 %s265, 4
          %s274 = int_to_ptr.vmem [resolvable:$true] %s273
          %276 = dma.hbm_to_vmem [thread:$0]  %s271, 256, %s274, %s262
        $region40: #{basic_block_3d.1} parent=35 // pred_fallthru
          _
      $region36: #{basic_block_3d.1} parent=5 // pred_fallthru
        _
      %p277 = scmp.le.s32.totalorder 1, %s21
      %p278 = scmp.lt.s32.totalorder %s21, 3
      %p279 = pnand %p277, %p278
      %p280 = pneg %p279
      // Predicated region
      $region41: #{basic_block_3d.1} parent=5 // pred_check
        _
      $region42: #{basic_block_3d.1} parent=5 // pred_check_branch
        %282 = sbr.rel (%p279) target = $region44
      $region43: #{basic_block_3d.1} parent=5 // pred_region
        %s283 = ssub.s32 %s21, 1
        %s284 = sand.u32 %s34, 1
        %s285 = scalar_lea.sflag [#allocation3], %s284
        %s286 = sand.u32 %s34, 1
        %s287 = smul.addr %s286, 16
        %s288 = scalar_lea.vmem [#allocation2], %s287
        // Predicated region
        $region45: #{basic_block_3d.1} parent=43 // pred_check
          %p289 = pneg %p47
        $region46: #{basic_block_3d.1} parent=43 // pred_check_branch
          %291 = sbr.rel (%p289) target = $region48
        $region47: #{basic_block_3d.1} parent=43 // pred_region
          %292 = dma.done %s285, 256
        $region48: #{basic_block_3d.1} parent=43 // pred_fallthru
          _
        // Predicated region
        $region49: #{basic_block_3d.1} parent=43 // pred_check
          %p293 = pneg %p68
        $region50: #{basic_block_3d.1} parent=43 // pred_check_branch
          %295 = sbr.rel (%p293) target = $region52
        $region51: #{basic_block_3d.1} parent=43 // pred_region
          %296 = dma.done [#allocation6], 384
        $region52: #{basic_block_3d.1} parent=43 // pred_fallthru
          _
        // Predicated region
        $region53: #{basic_block_3d.1} parent=43 // pred_check
          %p297 = pneg %p89
        $region54: #{basic_block_3d.1} parent=43 // pred_check_branch
          %299 = sbr.rel (%p297) target = $region56
        $region55: #{basic_block_3d.1} parent=43 // pred_region
          %300 = dma.done [#allocation6], 128
        $region56: #{basic_block_3d.1} parent=43 // pred_fallthru
          _
        // Predicated region
        $region57: #{basic_block_3d.1} parent=43 // pred_check
          %p301 = pneg %p110
        $region58: #{basic_block_3d.1} parent=43 // pred_check_branch
          %303 = sbr.rel (%p301) target = $region60
        $region59: #{basic_block_3d.1} parent=43 // pred_region
          %304 = dma.done [#allocation9], 384
        $region60: #{basic_block_3d.1} parent=43 // pred_fallthru
          _
        // Predicated region
        $region61: #{basic_block_3d.1} parent=43 // pred_check
          %p305 = pneg %p131
        $region62: #{basic_block_3d.1} parent=43 // pred_check_branch
          %307 = sbr.rel (%p305) target = $region64
        $region63: #{basic_block_3d.1} parent=43 // pred_region
          %308 = dma.done [#allocation9], 128
        $region64: #{basic_block_3d.1} parent=43 // pred_fallthru
          _
        // Predicated region
        $region65: #{basic_block_3d.1} parent=43 // pred_check
          %p309 = pneg %p152
        $region66: #{basic_block_3d.1} parent=43 // pred_check_branch
          %311 = sbr.rel (%p309) target = $region68
        $region67: #{basic_block_3d.1} parent=43 // pred_region
          %312 = dma.done [#allocation12], 6912
        $region68: #{basic_block_3d.1} parent=43 // pred_fallthru
          _
        %s313 = sand.u32 %s34, 1
        %s314 = scalar_lea.sflag [#allocation3], %s313
        %s315 = sand.u32 %s34, 1
        %s316 = smul.addr %s315, 16
        %s317 = scalar_lea.vmem [#allocation2], %s316
        %p318 = pneg %p47
        %p319 = pneg %p44
        %p320 = pneg %p68
        %p321 = pneg %p65
        %p322 = pneg %p89
        %p323 = pneg %p86
        %p324 = pneg %p110
        %p325 = pneg %p107
        %p326 = pneg %p131
        %p327 = pneg %p128
        %p328 = pneg %p152
        %p329 = pneg %p149
        %p330 = pneg %p178
        %p331 = pneg %p175
        %s332 = sand.u32 %s165, 1
        %s333 = scalar_lea.sflag [#allocation4], %s332
        %s334 = sand.u32 %s165, 1
        %s335 = smul.addr %s334, 16
        %s336 = scalar_lea.vmem [#allocation13], %s335
        %v337 = vld [vmem:[%s288] sm:$0xff]
        %v338 = vld [vmem:[%s288 + $0x8] sm:$0xff]
        %v339 = vld [vmem:[#allocation7] sm:$0xff]
        %340 = vrot.lane.b32.xlu0 %v337, 73
        %v341 = vpop.permute.xlu0 %340
        %342 = vrot.lane.b32.xlu0 %v338, 73
        %v343 = vpop.permute.xlu0 %342
        %v344 = vlaneseq
        %v345 = vand.u32 %v344, 127
        %vm346 = vcmp.lt.s32.totalorder %v345, 73
        %v347 = vsel %vm346, %v341, %v343
        %v348 = vsel %vm346, %v343, %v341
        %v349 = vld [vmem:[#allocation11] sm:$0xff]
        %v350 = vld [vmem:[#allocation11 + $0x8] sm:$0xff]
        %v351 = vmul.f32 %v348, %v349
        %v352 = vmul.f32 %v347, %v350
        %353 = vrot.lane.b32.xlu0 %v337, 72
        %v354 = vpop.permute.xlu0 %353
        %355 = vrot.lane.b32.xlu0 %v338, 72
        %v356 = vpop.permute.xlu0 %355
        %vm357 = vcmp.lt.s32.totalorder %v345, 72
        %v358 = vsel %vm357, %v354, %v356
        %v359 = vsel %vm357, %v356, %v354
        %s360 = scalar_lea.vmem [#allocation11], 16
        %v361 = vld [vmem:[%s360] sm:$0xff]
        %v362 = vld [vmem:[%s360 + $0x8] sm:$0xff]
        %v363 = vmul.f32 %v359, %v361
        %v364 = vmul.f32 %v358, %v362
        %365 = vrot.lane.b32.xlu0 %v337, 71
        %v366 = vpop.permute.xlu0 %365
        %367 = vrot.lane.b32.xlu0 %v338, 71
        %v368 = vpop.permute.xlu0 %367
        %vm369 = vcmp.lt.s32.totalorder %v345, 71
        %v370 = vsel %vm369, %v366, %v368
        %v371 = vsel %vm369, %v368, %v366
        %s372 = scalar_lea.vmem [#allocation11], 32
        %v373 = vld [vmem:[%s372] sm:$0xff]
        %v374 = vld [vmem:[%s372 + $0x8] sm:$0xff]
        %v375 = vmul.f32 %v371, %v373
        %v376 = vmul.f32 %v370, %v374
        %377 = vrot.lane.b32.xlu0 %v337, 65
        %v378 = vpop.permute.xlu0 %377
        %379 = vrot.lane.b32.xlu0 %v338, 65
        %v380 = vpop.permute.xlu0 %379
        %vm381 = vcmp.lt.s32.totalorder %v345, 65
        %v382 = vsel %vm381, %v378, %v380
        %v383 = vsel %vm381, %v380, %v378
        %s384 = scalar_lea.vmem [#allocation11], 48
        %v385 = vld [vmem:[%s384] sm:$0xff]
        %v386 = vld [vmem:[%s384 + $0x8] sm:$0xff]
        %v387 = vmul.f32 %v383, %v385
        %v388 = vmul.f32 %v382, %v386
        %389 = vrot.lane.b32.xlu0 %v337, 64
        %v390 = vpop.permute.xlu0 %389
        %391 = vrot.lane.b32.xlu0 %v338, 64
        %v392 = vpop.permute.xlu0 %391
        %vm393 = vcmp.lt.s32.totalorder %v345, 64
        %v394 = vsel %vm393, %v390, %v392
        %v395 = vsel %vm393, %v392, %v390
        %s396 = scalar_lea.vmem [#allocation11], 64
        %v397 = vld [vmem:[%s396] sm:$0xff]
        %v398 = vld [vmem:[%s396 + $0x8] sm:$0xff]
        %v399 = vmul.f32 %v395, %v397
        %v400 = vmul.f32 %v394, %v398
        %401 = vrot.lane.b32.xlu0 %v337, 63
        %v402 = vpop.permute.xlu0 %401
        %403 = vrot.lane.b32.xlu0 %v338, 63
        %v404 = vpop.permute.xlu0 %403
        %vm405 = vcmp.lt.s32.totalorder %v345, 63
        %v406 = vsel %vm405, %v402, %v404
        %v407 = vsel %vm405, %v404, %v402
        %s408 = scalar_lea.vmem [#allocation11], 80
        %v409 = vld [vmem:[%s408] sm:$0xff]
        %v410 = vld [vmem:[%s408 + $0x8] sm:$0xff]
        %v411 = vmul.f32 %v407, %v409
        %v412 = vmul.f32 %v406, %v410
        %413 = vrot.lane.b32.xlu0 %v337, 57
        %v414 = vpop.permute.xlu0 %413
        %415 = vrot.lane.b32.xlu0 %v338, 57
        %v416 = vpop.permute.xlu0 %415
        %vm417 = vcmp.lt.s32.totalorder %v345, 57
        %v418 = vsel %vm417, %v414, %v416
        %v419 = vsel %vm417, %v416, %v414
        %s420 = scalar_lea.vmem [#allocation11], 96
        %v421 = vld [vmem:[%s420] sm:$0xff]
        %v422 = vld [vmem:[%s420 + $0x8] sm:$0xff]
        %v423 = vmul.f32 %v419, %v421
        %v424 = vmul.f32 %v418, %v422
        %425 = vrot.lane.b32.xlu0 %v337, 56
        %v426 = vpop.permute.xlu0 %425
        %427 = vrot.lane.b32.xlu0 %v338, 56
        %v428 = vpop.permute.xlu0 %427
        %vm429 = vcmp.lt.s32.totalorder %v345, 56
        %v430 = vsel %vm429, %v426, %v428
        %v431 = vsel %vm429, %v428, %v426
        %s432 = scalar_lea.vmem [#allocation11], 112
        %v433 = vld [vmem:[%s432] sm:$0xff]
        %v434 = vld [vmem:[%s432 + $0x8] sm:$0xff]
        %v435 = vmul.f32 %v431, %v433
        %v436 = vmul.f32 %v430, %v434
        %437 = vrot.lane.b32.xlu0 %v337, 55
        %v438 = vpop.permute.xlu0 %437
        %439 = vrot.lane.b32.xlu0 %v338, 55
        %v440 = vpop.permute.xlu0 %439
        %vm441 = vcmp.lt.s32.totalorder %v345, 55
        %v442 = vsel %vm441, %v438, %v440
        %v443 = vsel %vm441, %v440, %v438
        %s444 = scalar_lea.vmem [#allocation11], 128
        %v445 = vld [vmem:[%s444] sm:$0xff]
        %v446 = vld [vmem:[%s444 + $0x8] sm:$0xff]
        %v447 = vmul.f32 %v443, %v445
        %v448 = vmul.f32 %v442, %v446
        %v449 = vld [vmem:[#allocation5] sm:$0xff]
        %vm450 = vcmask 588800
        %v452 = vsel %vm450, %v449, 0
        %454 = vmatprep.subr.mxu0 %v352
        %455 = vmatpush1.msra.mxu0 %v351
        %456 = vmatprep.subr.mxu0 %v364
        %457 = vmatpush1.msra.mxu0 %v363
        %458 = vmatprep.subr.mxu0 %v376
        %459 = vmatpush1.msra.mxu0 %v375
        %460 = vmatprep.subr.mxu0 %v388
        %461 = vmatpush1.msra.mxu0 %v387
        %462 = vmatprep.subr.mxu0 %v400
        %463 = vmatpush1.msra.mxu0 %v399
        %464 = vmatprep.subr.mxu0 %v412
        %465 = vmatpush1.msra.mxu0 %v411
        %466 = vmatprep.subr.mxu0 %v424
        %467 = vmatpush1.msra.mxu0 %v423
        %468 = vmatprep.subr.mxu0 %v436
        %469 = vmatpush1.msra.mxu0 %v435
        %470 = vmatprep.subr.mxu0 %v448
        %471 = vmatpush1.msra.mxu0 %v447
        %472 = vmatprep.subr.mxu0 0.0
        %473 = vmatpush1.msra.mxu0 0.0
        %474 = vmatprep.subr.mxu0 0.0
        %475 = vmatpush1.msra.mxu0 0.0
        %476 = vmatprep.subr.mxu0 0.0
        %477 = vmatpush1.msra.mxu0 0.0
        %478 = vmatprep.subr.mxu0 0.0
        %479 = vmatpush1.msra.mxu0 0.0
        %480 = vmatprep.subr.mxu0 0.0
        %481 = vmatpush1.msra.mxu0 0.0
        %482 = vmatprep.subr.mxu0 0.0
        %483 = vmatpush1.msra.mxu0 0.0
        %484 = vmatprep.subr.mxu0 0.0
        %485 = vmatpush1.msra.mxu0 0.0
        %486 = vmatprep.subr.mxu0 0.0
        %487 = vmatpush1.msra.mxu0 0.0
        %488 = vmatprep.subr.mxu0 0.0
        %489 = vmatpush1.msra.mxu0 0.0
        %490 = vmatprep.subr.mxu0 0.0
        %491 = vmatpush1.msra.mxu0 0.0
        %492 = vmatprep.subr.mxu0 0.0
        %493 = vmatpush1.msra.mxu0 0.0
        %494 = vmatprep.subr.mxu0 0.0
        %495 = vmatpush1.msra.mxu0 0.0
        %496 = vmatprep.subr.mxu0 0.0
        %497 = vmatpush1.msra.mxu0 0.0
        %498 = vmatprep.subr.mxu0 0.0
        %499 = vmatpush1.msra.mxu0 0.0
        %500 = vmatprep.subr.mxu0 0.0
        %501 = vmatpush1.msra.mxu0 0.0
        %502 = vmatprep.subr.mxu0 0.0
        %503 = vmatpush1.msra.mxu0 0.0
        %504 = vmatprep.subr.mxu0 0.0
        %505 = vmatpush1.msra.mxu0 0.0
        %506 = vmatprep.subr.mxu0 0.0
        %507 = vmatpush1.msra.mxu0 0.0
        %508 = vmatprep.subr.mxu0 0.0
        %509 = vmatpush1.msra.mxu0 0.0
        %510 = vmatprep.subr.mxu0 0.0
        %511 = vmatpush1.msra.mxu0 0.0
        %512 = vmatprep.subr.mxu0 0.0
        %513 = vmatpush1.msra.mxu0 0.0
        %514 = vmatprep.subr.mxu0 0.0
        %515 = vmatpush1.msra.mxu0 0.0
        %516 = vmatprep.subr.mxu0 0.0
        %517 = vmatpush1.msra.mxu0 0.0
        %518 = vmatprep.mubr.f32.mxu0 0.0
        %519 = vmatmul.mubr.f32.gmra.mrb[0].mxu0 %v452
        %v520 = vpop.f32.mrb[0].mxu0
        %v521 = vadd.f32 0.0, %v520
        %v522 = vpop.f32.mrb[0].mxu0
        %v523 = vadd.f32 0.0, %v522
        %524 = vdwg.mxu0
        %526 = vset.pattern.permute.xlu0 0
        %527 = vperm.xlu0 %526, %v339
        %v528 = vpop.permute.xlu0 %527
        %v530 = vadd.f32 %v528, %v521
        %v531 = vadd.f32 %v528, %v523
        %532 = vrot.lane.b32.xlu0 %v337, 9
        %v533 = vpop.permute.xlu0 %532
        %534 = vrot.lane.b32.xlu0 %v338, 9
        %v535 = vpop.permute.xlu0 %534
        %vm536 = vcmp.lt.s32.totalorder %v345, 9
        %v537 = vsel %vm536, %v533, %v535
        %v538 = vsel %vm536, %v535, %v533
        %s539 = scalar_lea.vmem [#allocation11], 144
        %v540 = vld [vmem:[%s539] sm:$0xff]
        %v541 = vld [vmem:[%s539 + $0x8] sm:$0xff]
        %v542 = vmul.f32 %v538, %v540
        %v543 = vmul.f32 %v537, %v541
        %544 = vrot.lane.b32.xlu0 %v337, 8
        %v545 = vpop.permute.xlu0 %544
        %546 = vrot.lane.b32.xlu0 %v338, 8
        %v547 = vpop.permute.xlu0 %546
        %vm548 = vcmp.lt.s32.totalorder %v345, 8
        %v549 = vsel %vm548, %v545, %v547
        %v550 = vsel %vm548, %v547, %v545
        %s551 = scalar_lea.vmem [#allocation11], 160
        %v552 = vld [vmem:[%s551] sm:$0xff]
        %v553 = vld [vmem:[%s551 + $0x8] sm:$0xff]
        %v554 = vmul.f32 %v550, %v552
        %v555 = vmul.f32 %v549, %v553
        %556 = vrot.lane.b32.xlu0 %v337, 7
        %v557 = vpop.permute.xlu0 %556
        %558 = vrot.lane.b32.xlu0 %v338, 7
        %v559 = vpop.permute.xlu0 %558
        %vm560 = vcmp.lt.s32.totalorder %v345, 7
        %v561 = vsel %vm560, %v557, %v559
        %v562 = vsel %vm560, %v559, %v557
        %s563 = scalar_lea.vmem [#allocation11], 176
        %v564 = vld [vmem:[%s563] sm:$0xff]
        %v565 = vld [vmem:[%s563 + $0x8] sm:$0xff]
        %v566 = vmul.f32 %v562, %v564
        %v567 = vmul.f32 %v561, %v565
        %568 = vrot.lane.b32.xlu0 %v337, 1
        %v569 = vpop.permute.xlu0 %568
        %570 = vrot.lane.b32.xlu0 %v338, 1
        %v571 = vpop.permute.xlu0 %570
        %vm572 = vcmp.lt.s32.totalorder %v345, 1
        %v573 = vsel %vm572, %v569, %v571
        %v574 = vsel %vm572, %v571, %v569
        %s575 = scalar_lea.vmem [#allocation11], 192
        %v576 = vld [vmem:[%s575] sm:$0xff]
        %v577 = vld [vmem:[%s575 + $0x8] sm:$0xff]
        %v578 = vmul.f32 %v574, %v576
        %v579 = vmul.f32 %v573, %v577
        %580 = vrot.lane.b32.xlu0 %v337, 127
        %v581 = vpop.permute.xlu0 %580
        %582 = vrot.lane.b32.xlu0 %v338, 127
        %v583 = vpop.permute.xlu0 %582
        %vm584 = vcmp.lt.s32.totalorder %v345, 127
        %v585 = vsel %vm584, %v581, %v583
        %v586 = vsel %vm584, %v583, %v581
        %s587 = scalar_lea.vmem [#allocation11], 224
        %v588 = vld [vmem:[%s587] sm:$0xff]
        %v589 = vld [vmem:[%s587 + $0x8] sm:$0xff]
        %v590 = vmul.f32 %v585, %v588
        %v591 = vmul.f32 %v586, %v589
        %592 = vrot.lane.b32.xlu0 %v337, 121
        %v593 = vpop.permute.xlu0 %592
        %594 = vrot.lane.b32.xlu0 %v338, 121
        %v595 = vpop.permute.xlu0 %594
        %vm596 = vcmp.lt.s32.totalorder %v345, 121
        %v597 = vsel %vm596, %v593, %v595
        %v598 = vsel %vm596, %v595, %v593
        %s599 = scalar_lea.vmem [#allocation11], 240
        %v600 = vld [vmem:[%s599] sm:$0xff]
        %v601 = vld [vmem:[%s599 + $0x8] sm:$0xff]
        %v602 = vmul.f32 %v597, %v600
        %v603 = vmul.f32 %v598, %v601
        %604 = vrot.lane.b32.xlu0 %v337, 120
        %v605 = vpop.permute.xlu0 %604
        %606 = vrot.lane.b32.xlu0 %v338, 120
        %v607 = vpop.permute.xlu0 %606
        %vm608 = vcmp.lt.s32.totalorder %v345, 120
        %v609 = vsel %vm608, %v605, %v607
        %v610 = vsel %vm608, %v607, %v605
        %s611 = scalar_lea.vmem [#allocation11], 256
        %v612 = vld [vmem:[%s611] sm:$0xff]
        %v613 = vld [vmem:[%s611 + $0x8] sm:$0xff]
        %v614 = vmul.f32 %v609, %v612
        %v615 = vmul.f32 %v610, %v613
        %616 = vrot.lane.b32.xlu0 %v337, 119
        %v617 = vpop.permute.xlu0 %616
        %618 = vrot.lane.b32.xlu0 %v338, 119
        %v619 = vpop.permute.xlu0 %618
        %vm620 = vcmp.lt.s32.totalorder %v345, 119
        %v621 = vsel %vm620, %v617, %v619
        %v622 = vsel %vm620, %v619, %v617
        %s623 = scalar_lea.vmem [#allocation11], 272
        %v624 = vld [vmem:[%s623] sm:$0xff]
        %v625 = vld [vmem:[%s623 + $0x8] sm:$0xff]
        %v626 = vmul.f32 %v621, %v624
        %v627 = vmul.f32 %v622, %v625
        %s628 = scalar_lea.vmem [#allocation5], 8
        %v629 = vld [vmem:[%s628] sm:$0xff]
        %v631 = vsel %vm450, %v629, 0
        %633 = vmatprep.subr.mxu0 %v543
        %634 = vmatpush1.msra.mxu0 %v542
        %635 = vmatprep.subr.mxu0 %v555
        %636 = vmatpush1.msra.mxu0 %v554
        %637 = vmatprep.subr.mxu0 %v567
        %638 = vmatpush1.msra.mxu0 %v566
        %639 = vmatprep.subr.mxu0 %v579
        %640 = vmatpush1.msra.mxu0 %v578
        %641 = vmatprep.subr.mxu0 %v338
        %642 = vmatpush1.msra.mxu0 %v337
        %643 = vmatprep.subr.mxu0 %v591
        %644 = vmatpush1.msra.mxu0 %v590
        %645 = vmatprep.subr.mxu0 %v603
        %646 = vmatpush1.msra.mxu0 %v602
        %647 = vmatprep.subr.mxu0 %v615
        %648 = vmatpush1.msra.mxu0 %v614
        %649 = vmatprep.subr.mxu0 %v627
        %650 = vmatpush1.msra.mxu0 %v626
        %651 = vmatprep.subr.mxu0 0.0
        %652 = vmatpush1.msra.mxu0 0.0
        %653 = vmatprep.subr.mxu0 0.0
        %654 = vmatpush1.msra.mxu0 0.0
        %655 = vmatprep.subr.mxu0 0.0
        %656 = vmatpush1.msra.mxu0 0.0
        %657 = vmatprep.subr.mxu0 0.0
        %658 = vmatpush1.msra.mxu0 0.0
        %659 = vmatprep.subr.mxu0 0.0
        %660 = vmatpush1.msra.mxu0 0.0
        %661 = vmatprep.subr.mxu0 0.0
        %662 = vmatpush1.msra.mxu0 0.0
        %663 = vmatprep.subr.mxu0 0.0
        %664 = vmatpush1.msra.mxu0 0.0
        %665 = vmatprep.subr.mxu0 0.0
        %666 = vmatpush1.msra.mxu0 0.0
        %667 = vmatprep.subr.mxu0 0.0
        %668 = vmatpush1.msra.mxu0 0.0
        %669 = vmatprep.subr.mxu0 0.0
        %670 = vmatpush1.msra.mxu0 0.0
        %671 = vmatprep.subr.mxu0 0.0
        %672 = vmatpush1.msra.mxu0 0.0
        %673 = vmatprep.subr.mxu0 0.0
        %674 = vmatpush1.msra.mxu0 0.0
        %675 = vmatprep.subr.mxu0 0.0
        %676 = vmatpush1.msra.mxu0 0.0
        %677 = vmatprep.subr.mxu0 0.0
        %678 = vmatpush1.msra.mxu0 0.0
        %679 = vmatprep.subr.mxu0 0.0
        %680 = vmatpush1.msra.mxu0 0.0
        %681 = vmatprep.subr.mxu0 0.0
        %682 = vmatpush1.msra.mxu0 0.0
        %683 = vmatprep.subr.mxu0 0.0
        %684 = vmatpush1.msra.mxu0 0.0
        %685 = vmatprep.subr.mxu0 0.0
        %686 = vmatpush1.msra.mxu0 0.0
        %687 = vmatprep.subr.mxu0 0.0
        %688 = vmatpush1.msra.mxu0 0.0
        %689 = vmatprep.subr.mxu0 0.0
        %690 = vmatpush1.msra.mxu0 0.0
        %691 = vmatprep.subr.mxu0 0.0
        %692 = vmatpush1.msra.mxu0 0.0
        %693 = vmatprep.subr.mxu0 0.0
        %694 = vmatpush1.msra.mxu0 0.0
        %695 = vmatprep.subr.mxu0 0.0
        %696 = vmatpush1.msra.mxu0 0.0
        %697 = vmatprep.mubr.f32.mxu0 0.0
        %698 = vmatmul.mubr.f32.gmra.mrb[0].mxu0 %v631
        %v699 = vpop.f32.mrb[0].mxu0
        %v700 = vadd.f32 0.0, %v699
        %v701 = vpop.f32.mrb[0].mxu0
        %v702 = vadd.f32 0.0, %v701
        %703 = vdwg.mxu0
        %v704 = vadd.f32 %v530, %v700
        %v705 = vadd.f32 %v531, %v702
        %s706 = scalar_lea.vmem [#allocation11], 288
        %v707 = vld [vmem:[%s706] sm:$0xff]
        %v708 = vld [vmem:[%s706 + $0x8] sm:$0xff]
        %v709 = vmul.f32 %v347, %v707
        %v710 = vmul.f32 %v348, %v708
        %s711 = scalar_lea.vmem [#allocation11], 304
        %v712 = vld [vmem:[%s711] sm:$0xff]
        %v713 = vld [vmem:[%s711 + $0x8] sm:$0xff]
        %v714 = vmul.f32 %v358, %v712
        %v715 = vmul.f32 %v359, %v713
        %s716 = scalar_lea.vmem [#allocation11], 320
        %v717 = vld [vmem:[%s716] sm:$0xff]
        %v718 = vld [vmem:[%s716 + $0x8] sm:$0xff]
        %v719 = vmul.f32 %v370, %v717
        %v720 = vmul.f32 %v371, %v718
        %s721 = scalar_lea.vmem [#allocation11], 336
        %v722 = vld [vmem:[%s721] sm:$0xff]
        %v723 = vld [vmem:[%s721 + $0x8] sm:$0xff]
        %v724 = vmul.f32 %v382, %v722
        %v725 = vmul.f32 %v383, %v723
        %s726 = scalar_lea.vmem [#allocation11], 352
        %v727 = vld [vmem:[%s726] sm:$0xff]
        %v728 = vld [vmem:[%s726 + $0x8] sm:$0xff]
        %v729 = vmul.f32 %v394, %v727
        %v730 = vmul.f32 %v395, %v728
        %s731 = scalar_lea.vmem [#allocation11], 368
        %v732 = vld [vmem:[%s731] sm:$0xff]
        %v733 = vld [vmem:[%s731 + $0x8] sm:$0xff]
        %v734 = vmul.f32 %v406, %v732
        %v735 = vmul.f32 %v407, %v733
        %s736 = scalar_lea.vmem [#allocation11], 384
        %v737 = vld [vmem:[%s736] sm:$0xff]
        %v738 = vld [vmem:[%s736 + $0x8] sm:$0xff]
        %v739 = vmul.f32 %v418, %v737
        %v740 = vmul.f32 %v419, %v738
        %s741 = scalar_lea.vmem [#allocation11], 400
        %v742 = vld [vmem:[%s741] sm:$0xff]
        %v743 = vld [vmem:[%s741 + $0x8] sm:$0xff]
        %v744 = vmul.f32 %v430, %v742
        %v745 = vmul.f32 %v431, %v743
        %s746 = scalar_lea.vmem [#allocation11], 416
        %v747 = vld [vmem:[%s746] sm:$0xff]
        %v748 = vld [vmem:[%s746 + $0x8] sm:$0xff]
        %v749 = vmul.f32 %v442, %v747
        %v750 = vmul.f32 %v443, %v748
        %s751 = scalar_lea.vmem [#allocation5], 16
        %v752 = vld [vmem:[%s751] sm:$0xff]
        %v754 = vsel %vm450, %v752, 0
        %756 = vmatprep.subr.mxu0 %v710
        %757 = vmatpush1.msra.mxu0 %v709
        %758 = vmatprep.subr.mxu0 %v715
        %759 = vmatpush1.msra.mxu0 %v714
        %760 = vmatprep.subr.mxu0 %v720
        %761 = vmatpush1.msra.mxu0 %v719
        %762 = vmatprep.subr.mxu0 %v725
        %763 = vmatpush1.msra.mxu0 %v724
        %764 = vmatprep.subr.mxu0 %v730
        %765 = vmatpush1.msra.mxu0 %v729
        %766 = vmatprep.subr.mxu0 %v735
        %767 = vmatpush1.msra.mxu0 %v734
        %768 = vmatprep.subr.mxu0 %v740
        %769 = vmatpush1.msra.mxu0 %v739
        %770 = vmatprep.subr.mxu0 %v745
        %771 = vmatpush1.msra.mxu0 %v744
        %772 = vmatprep.subr.mxu0 %v750
        %773 = vmatpush1.msra.mxu0 %v749
        %774 = vmatprep.subr.mxu0 0.0
        %775 = vmatpush1.msra.mxu0 0.0
        %776 = vmatprep.subr.mxu0 0.0
        %777 = vmatpush1.msra.mxu0 0.0
        %778 = vmatprep.subr.mxu0 0.0
        %779 = vmatpush1.msra.mxu0 0.0
        %780 = vmatprep.subr.mxu0 0.0
        %781 = vmatpush1.msra.mxu0 0.0
        %782 = vmatprep.subr.mxu0 0.0
        %783 = vmatpush1.msra.mxu0 0.0
        %784 = vmatprep.subr.mxu0 0.0
        %785 = vmatpush1.msra.mxu0 0.0
        %786 = vmatprep.subr.mxu0 0.0
        %787 = vmatpush1.msra.mxu0 0.0
        %788 = vmatprep.subr.mxu0 0.0
        %789 = vmatpush1.msra.mxu0 0.0
        %790 = vmatprep.subr.mxu0 0.0
        %791 = vmatpush1.msra.mxu0 0.0
        %792 = vmatprep.subr.mxu0 0.0
        %793 = vmatpush1.msra.mxu0 0.0
        %794 = vmatprep.subr.mxu0 0.0
        %795 = vmatpush1.msra.mxu0 0.0
        %796 = vmatprep.subr.mxu0 0.0
        %797 = vmatpush1.msra.mxu0 0.0
        %798 = vmatprep.subr.mxu0 0.0
        %799 = vmatpush1.msra.mxu0 0.0
        %800 = vmatprep.subr.mxu0 0.0
        %801 = vmatpush1.msra.mxu0 0.0
        %802 = vmatprep.subr.mxu0 0.0
        %803 = vmatpush1.msra.mxu0 0.0
        %804 = vmatprep.subr.mxu0 0.0
        %805 = vmatpush1.msra.mxu0 0.0
        %806 = vmatprep.subr.mxu0 0.0
        %807 = vmatpush1.msra.mxu0 0.0
        %808 = vmatprep.subr.mxu0 0.0
        %809 = vmatpush1.msra.mxu0 0.0
        %810 = vmatprep.subr.mxu0 0.0
        %811 = vmatpush1.msra.mxu0 0.0
        %812 = vmatprep.subr.mxu0 0.0
        %813 = vmatpush1.msra.mxu0 0.0
        %814 = vmatprep.subr.mxu0 0.0
        %815 = vmatpush1.msra.mxu0 0.0
        %816 = vmatprep.subr.mxu0 0.0
        %817 = vmatpush1.msra.mxu0 0.0
        %818 = vmatprep.subr.mxu0 0.0
        %819 = vmatpush1.msra.mxu0 0.0
        %820 = vmatprep.mubr.f32.mxu0 0.0
        %821 = vmatmul.mubr.f32.gmra.mrb[0].mxu0 %v754
        %v822 = vpop.f32.mrb[0].mxu0
        %v823 = vadd.f32 0.0, %v822
        %v824 = vpop.f32.mrb[0].mxu0
        %v825 = vadd.f32 0.0, %v824
        %826 = vdwg.mxu0
        %v827 = vadd.f32 %v704, %v823
        %v828 = vadd.f32 %v705, %v825
        %v829 = vmax.f32 %v827, 0.0
        %v830 = vmax.f32 %v828, 0.0
        %v831 = vld [vmem:[#allocation10] sm:$0xff]
        %832 = vrot.lane.b32.xlu0 %v829, 73
        %v833 = vpop.permute.xlu0 %832
        %834 = vrot.lane.b32.xlu0 %v830, 73
        %v835 = vpop.permute.xlu0 %834
        %v836 = vsel %vm346, %v833, %v835
        %v837 = vsel %vm346, %v835, %v833
        %v838 = vmul.f32 %v837, %v349
        %v839 = vmul.f32 %v836, %v350
        %840 = vrot.lane.b32.xlu0 %v829, 72
        %v841 = vpop.permute.xlu0 %840
        %842 = vrot.lane.b32.xlu0 %v830, 72
        %v843 = vpop.permute.xlu0 %842
        %v844 = vsel %vm357, %v841, %v843
        %v845 = vsel %vm357, %v843, %v841
        %v846 = vmul.f32 %v845, %v361
        %v847 = vmul.f32 %v844, %v362
        %848 = vrot.lane.b32.xlu0 %v829, 71
        %v849 = vpop.permute.xlu0 %848
        %850 = vrot.lane.b32.xlu0 %v830, 71
        %v851 = vpop.permute.xlu0 %850
        %v852 = vsel %vm369, %v849, %v851
        %v853 = vsel %vm369, %v851, %v849
        %v854 = vmul.f32 %v853, %v373
        %v855 = vmul.f32 %v852, %v374
        %856 = vrot.lane.b32.xlu0 %v829, 65
        %v857 = vpop.permute.xlu0 %856
        %858 = vrot.lane.b32.xlu0 %v830, 65
        %v859 = vpop.permute.xlu0 %858
        %v860 = vsel %vm381, %v857, %v859
        %v861 = vsel %vm381, %v859, %v857
        %v862 = vmul.f32 %v861, %v385
        %v863 = vmul.f32 %v860, %v386
        %864 = vrot.lane.b32.xlu0 %v829, 64
        %v865 = vpop.permute.xlu0 %864
        %866 = vrot.lane.b32.xlu0 %v830, 64
        %v867 = vpop.permute.xlu0 %866
        %v868 = vsel %vm393, %v865, %v867
        %v869 = vsel %vm393, %v867, %v865
        %v870 = vmul.f32 %v869, %v397
        %v871 = vmul.f32 %v868, %v398
        %872 = vrot.lane.b32.xlu0 %v829, 63
        %v873 = vpop.permute.xlu0 %872
        %874 = vrot.lane.b32.xlu0 %v830, 63
        %v875 = vpop.permute.xlu0 %874
        %v876 = vsel %vm405, %v873, %v875
        %v877 = vsel %vm405, %v875, %v873
        %v878 = vmul.f32 %v877, %v409
        %v879 = vmul.f32 %v876, %v410
        %880 = vrot.lane.b32.xlu0 %v829, 57
        %v881 = vpop.permute.xlu0 %880
        %882 = vrot.lane.b32.xlu0 %v830, 57
        %v883 = vpop.permute.xlu0 %882
        %v884 = vsel %vm417, %v881, %v883
        %v885 = vsel %vm417, %v883, %v881
        %v886 = vmul.f32 %v885, %v421
        %v887 = vmul.f32 %v884, %v422
        %888 = vrot.lane.b32.xlu0 %v829, 56
        %v889 = vpop.permute.xlu0 %888
        %890 = vrot.lane.b32.xlu0 %v830, 56
        %v891 = vpop.permute.xlu0 %890
        %v892 = vsel %vm429, %v889, %v891
        %v893 = vsel %vm429, %v891, %v889
        %v894 = vmul.f32 %v893, %v433
        %v895 = vmul.f32 %v892, %v434
        %896 = vrot.lane.b32.xlu0 %v829, 55
        %v897 = vpop.permute.xlu0 %896
        %898 = vrot.lane.b32.xlu0 %v830, 55
        %v899 = vpop.permute.xlu0 %898
        %v900 = vsel %vm441, %v897, %v899
        %v901 = vsel %vm441, %v899, %v897
        %v902 = vmul.f32 %v901, %v445
        %v903 = vmul.f32 %v900, %v446
        %v904 = vld [vmem:[#allocation8] sm:$0xff]
        %v906 = vsel %vm450, %v904, 0
        %908 = vmatprep.subr.mxu0 %v839
        %909 = vmatpush1.msra.mxu0 %v838
        %910 = vmatprep.subr.mxu0 %v847
        %911 = vmatpush1.msra.mxu0 %v846
        %912 = vmatprep.subr.mxu0 %v855
        %913 = vmatpush1.msra.mxu0 %v854
        %914 = vmatprep.subr.mxu0 %v863
        %915 = vmatpush1.msra.mxu0 %v862
        %916 = vmatprep.subr.mxu0 %v871
        %917 = vmatpush1.msra.mxu0 %v870
        %918 = vmatprep.subr.mxu0 %v879
        %919 = vmatpush1.msra.mxu0 %v878
        %920 = vmatprep.subr.mxu0 %v887
        %921 = vmatpush1.msra.mxu0 %v886
        %922 = vmatprep.subr.mxu0 %v895
        %923 = vmatpush1.msra.mxu0 %v894
        %924 = vmatprep.subr.mxu0 %v903
        %925 = vmatpush1.msra.mxu0 %v902
        %926 = vmatprep.subr.mxu0 0.0
        %927 = vmatpush1.msra.mxu0 0.0
        %928 = vmatprep.subr.mxu0 0.0
        %929 = vmatpush1.msra.mxu0 0.0
        %930 = vmatprep.subr.mxu0 0.0
        %931 = vmatpush1.msra.mxu0 0.0
        %932 = vmatprep.subr.mxu0 0.0
        %933 = vmatpush1.msra.mxu0 0.0
        %934 = vmatprep.subr.mxu0 0.0
        %935 = vmatpush1.msra.mxu0 0.0
        %936 = vmatprep.subr.mxu0 0.0
        %937 = vmatpush1.msra.mxu0 0.0
        %938 = vmatprep.subr.mxu0 0.0
        %939 = vmatpush1.msra.mxu0 0.0
        %940 = vmatprep.subr.mxu0 0.0
        %941 = vmatpush1.msra.mxu0 0.0
        %942 = vmatprep.subr.mxu0 0.0
        %943 = vmatpush1.msra.mxu0 0.0
        %944 = vmatprep.subr.mxu0 0.0
        %945 = vmatpush1.msra.mxu0 0.0
        %946 = vmatprep.subr.mxu0 0.0
        %947 = vmatpush1.msra.mxu0 0.0
        %948 = vmatprep.subr.mxu0 0.0
        %949 = vmatpush1.msra.mxu0 0.0
        %950 = vmatprep.subr.mxu0 0.0
        %951 = vmatpush1.msra.mxu0 0.0
        %952 = vmatprep.subr.mxu0 0.0
        %953 = vmatpush1.msra.mxu0 0.0
        %954 = vmatprep.subr.mxu0 0.0
        %955 = vmatpush1.msra.mxu0 0.0
        %956 = vmatprep.subr.mxu0 0.0
        %957 = vmatpush1.msra.mxu0 0.0
        %958 = vmatprep.subr.mxu0 0.0
        %959 = vmatpush1.msra.mxu0 0.0
        %960 = vmatprep.subr.mxu0 0.0
        %961 = vmatpush1.msra.mxu0 0.0
        %962 = vmatprep.subr.mxu0 0.0
        %963 = vmatpush1.msra.mxu0 0.0
        %964 = vmatprep.subr.mxu0 0.0
        %965 = vmatpush1.msra.mxu0 0.0
        %966 = vmatprep.subr.mxu0 0.0
        %967 = vmatpush1.msra.mxu0 0.0
        %968 = vmatprep.subr.mxu0 0.0
        %969 = vmatpush1.msra.mxu0 0.0
        %970 = vmatprep.subr.mxu0 0.0
        %971 = vmatpush1.msra.mxu0 0.0
        %972 = vmatprep.mubr.f32.mxu0 0.0
        %973 = vmatmul.mubr.f32.gmra.mrb[0].mxu0 %v906
        %v974 = vpop.f32.mrb[0].mxu0
        %v975 = vadd.f32 0.0, %v974
        %v976 = vpop.f32.mrb[0].mxu0
        %v977 = vadd.f32 0.0, %v976
        %978 = vdwg.mxu0
        %980 = vset.pattern.permute.xlu0 0
        %981 = vperm.xlu0 %980, %v831
        %v982 = vpop.permute.xlu0 %981
        %v984 = vadd.f32 %v982, %v975
        %v985 = vadd.f32 %v982, %v977
        %986 = vrot.lane.b32.xlu0 %v829, 9
        %v987 = vpop.permute.xlu0 %986
        %988 = vrot.lane.b32.xlu0 %v830, 9
        %v989 = vpop.permute.xlu0 %988
        %v990 = vsel %vm536, %v987, %v989
        %v991 = vsel %vm536, %v989, %v987
        %v992 = vmul.f32 %v991, %v540
        %v993 = vmul.f32 %v990, %v541
        %994 = vrot.lane.b32.xlu0 %v829, 8
        %v995 = vpop.permute.xlu0 %994
        %996 = vrot.lane.b32.xlu0 %v830, 8
        %v997 = vpop.permute.xlu0 %996
        %v998 = vsel %vm548, %v995, %v997
        %v999 = vsel %vm548, %v997, %v995
        %v1000 = vmul.f32 %v999, %v552
        %v1001 = vmul.f32 %v998, %v553
        %1002 = vrot.lane.b32.xlu0 %v829, 7
        %v1003 = vpop.permute.xlu0 %1002
        %1004 = vrot.lane.b32.xlu0 %v830, 7
        %v1005 = vpop.permute.xlu0 %1004
        %v1006 = vsel %vm560, %v1003, %v1005
        %v1007 = vsel %vm560, %v1005, %v1003
        %v1008 = vmul.f32 %v1007, %v564
        %v1009 = vmul.f32 %v1006, %v565
        %1010 = vrot.lane.b32.xlu0 %v829, 1
        %v1011 = vpop.permute.xlu0 %1010
        %1012 = vrot.lane.b32.xlu0 %v830, 1
        %v1013 = vpop.permute.xlu0 %1012
        %v1014 = vsel %vm572, %v1011, %v1013
        %v1015 = vsel %vm572, %v1013, %v1011
        %v1016 = vmul.f32 %v1015, %v576
        %v1017 = vmul.f32 %v1014, %v577
        %1018 = vrot.lane.b32.xlu0 %v829, 127
        %v1019 = vpop.permute.xlu0 %1018
        %1020 = vrot.lane.b32.xlu0 %v830, 127
        %v1021 = vpop.permute.xlu0 %1020
        %v1022 = vsel %vm584, %v1019, %v1021
        %v1023 = vsel %vm584, %v1021, %v1019
        %v1024 = vmul.f32 %v1022, %v588
        %v1025 = vmul.f32 %v1023, %v589
        %1026 = vrot.lane.b32.xlu0 %v829, 121
        %v1027 = vpop.permute.xlu0 %1026
        %1028 = vrot.lane.b32.xlu0 %v830, 121
        %v1029 = vpop.permute.xlu0 %1028
        %v1030 = vsel %vm596, %v1027, %v1029
        %v1031 = vsel %vm596, %v1029, %v1027
        %v1032 = vmul.f32 %v1030, %v600
        %v1033 = vmul.f32 %v1031, %v601
        %1034 = vrot.lane.b32.xlu0 %v829, 120
        %v1035 = vpop.permute.xlu0 %1034
        %1036 = vrot.lane.b32.xlu0 %v830, 120
        %v1037 = vpop.permute.xlu0 %1036
        %v1038 = vsel %vm608, %v1035, %v1037
        %v1039 = vsel %vm608, %v1037, %v1035
        %v1040 = vmul.f32 %v1038, %v612
        %v1041 = vmul.f32 %v1039, %v613
        %1042 = vrot.lane.b32.xlu0 %v829, 119
        %v1043 = vpop.permute.xlu0 %1042
        %1044 = vrot.lane.b32.xlu0 %v830, 119
        %v1045 = vpop.permute.xlu0 %1044
        %v1046 = vsel %vm620, %v1043, %v1045
        %v1047 = vsel %vm620, %v1045, %v1043
        %v1048 = vmul.f32 %v1046, %v624
        %v1049 = vmul.f32 %v1047, %v625
        %s1050 = scalar_lea.vmem [#allocation8], 8
        %v1051 = vld [vmem:[%s1050] sm:$0xff]
        %v1053 = vsel %vm450, %v1051, 0
        %1055 = vmatprep.subr.mxu0 %v993
        %1056 = vmatpush1.msra.mxu0 %v992
        %1057 = vmatprep.subr.mxu0 %v1001
        %1058 = vmatpush1.msra.mxu0 %v1000
        %1059 = vmatprep.subr.mxu0 %v1009
        %1060 = vmatpush1.msra.mxu0 %v1008
        %1061 = vmatprep.subr.mxu0 %v1017
        %1062 = vmatpush1.msra.mxu0 %v1016
        %1063 = vmatprep.subr.mxu0 %v830
        %1064 = vmatpush1.msra.mxu0 %v829
        %1065 = vmatprep.subr.mxu0 %v1025
        %1066 = vmatpush1.msra.mxu0 %v1024
        %1067 = vmatprep.subr.mxu0 %v1033
        %1068 = vmatpush1.msra.mxu0 %v1032
        %1069 = vmatprep.subr.mxu0 %v1041
        %1070 = vmatpush1.msra.mxu0 %v1040
        %1071 = vmatprep.subr.mxu0 %v1049
        %1072 = vmatpush1.msra.mxu0 %v1048
        %1073 = vmatprep.subr.mxu0 0.0
        %1074 = vmatpush1.msra.mxu0 0.0
        %1075 = vmatprep.subr.mxu0 0.0
        %1076 = vmatpush1.msra.mxu0 0.0
        %1077 = vmatprep.subr.mxu0 0.0
        %1078 = vmatpush1.msra.mxu0 0.0
        %1079 = vmatprep.subr.mxu0 0.0
        %1080 = vmatpush1.msra.mxu0 0.0
        %1081 = vmatprep.subr.mxu0 0.0
        %1082 = vmatpush1.msra.mxu0 0.0
        %1083 = vmatprep.subr.mxu0 0.0
        %1084 = vmatpush1.msra.mxu0 0.0
        %1085 = vmatprep.subr.mxu0 0.0
        %1086 = vmatpush1.msra.mxu0 0.0
        %1087 = vmatprep.subr.mxu0 0.0
        %1088 = vmatpush1.msra.mxu0 0.0
        %1089 = vmatprep.subr.mxu0 0.0
        %1090 = vmatpush1.msra.mxu0 0.0
        %1091 = vmatprep.subr.mxu0 0.0
        %1092 = vmatpush1.msra.mxu0 0.0
        %1093 = vmatprep.subr.mxu0 0.0
        %1094 = vmatpush1.msra.mxu0 0.0
        %1095 = vmatprep.subr.mxu0 0.0
        %1096 = vmatpush1.msra.mxu0 0.0
        %1097 = vmatprep.subr.mxu0 0.0
        %1098 = vmatpush1.msra.mxu0 0.0
        %1099 = vmatprep.subr.mxu0 0.0
        %1100 = vmatpush1.msra.mxu0 0.0
        %1101 = vmatprep.subr.mxu0 0.0
        %1102 = vmatpush1.msra.mxu0 0.0
        %1103 = vmatprep.subr.mxu0 0.0
        %1104 = vmatpush1.msra.mxu0 0.0
        %1105 = vmatprep.subr.mxu0 0.0
        %1106 = vmatpush1.msra.mxu0 0.0
        %1107 = vmatprep.subr.mxu0 0.0
        %1108 = vmatpush1.msra.mxu0 0.0
        %1109 = vmatprep.subr.mxu0 0.0
        %1110 = vmatpush1.msra.mxu0 0.0
        %1111 = vmatprep.subr.mxu0 0.0
        %1112 = vmatpush1.msra.mxu0 0.0
        %1113 = vmatprep.subr.mxu0 0.0
        %1114 = vmatpush1.msra.mxu0 0.0
        %1115 = vmatprep.subr.mxu0 0.0
        %1116 = vmatpush1.msra.mxu0 0.0
        %1117 = vmatprep.subr.mxu0 0.0
        %1118 = vmatpush1.msra.mxu0 0.0
        %1119 = vmatprep.mubr.f32.mxu0 0.0
        %1120 = vmatmul.mubr.f32.gmra.mrb[0].mxu0 %v1053
        %v1121 = vpop.f32.mrb[0].mxu0
        %v1122 = vadd.f32 0.0, %v1121
        %v1123 = vpop.f32.mrb[0].mxu0
        %v1124 = vadd.f32 0.0, %v1123
        %1125 = vdwg.mxu0
        %v1126 = vadd.f32 %v984, %v1122
        %v1127 = vadd.f32 %v985, %v1124
        %v1128 = vmul.f32 %v836, %v707
        %v1129 = vmul.f32 %v837, %v708
        %v1130 = vmul.f32 %v844, %v712
        %v1131 = vmul.f32 %v845, %v713
        %v1132 = vmul.f32 %v852, %v717
        %v1133 = vmul.f32 %v853, %v718
        %v1134 = vmul.f32 %v860, %v722
        %v1135 = vmul.f32 %v861, %v723
        %v1136 = vmul.f32 %v868, %v727
        %v1137 = vmul.f32 %v869, %v728
        %v1138 = vmul.f32 %v876, %v732
        %v1139 = vmul.f32 %v877, %v733
        %v1140 = vmul.f32 %v884, %v737
        %v1141 = vmul.f32 %v885, %v738
        %v1142 = vmul.f32 %v892, %v742
        %v1143 = vmul.f32 %v893, %v743
        %v1144 = vmul.f32 %v900, %v747
        %v1145 = vmul.f32 %v901, %v748
        %s1146 = scalar_lea.vmem [#allocation8], 16
        %v1147 = vld [vmem:[%s1146] sm:$0xff]
        %v1149 = vsel %vm450, %v1147, 0
        %1151 = vmatprep.subr.mxu0 %v1129
        %1152 = vmatpush1.msra.mxu0 %v1128
        %1153 = vmatprep.subr.mxu0 %v1131
        %1154 = vmatpush1.msra.mxu0 %v1130
        %1155 = vmatprep.subr.mxu0 %v1133
        %1156 = vmatpush1.msra.mxu0 %v1132
        %1157 = vmatprep.subr.mxu0 %v1135
        %1158 = vmatpush1.msra.mxu0 %v1134
        %1159 = vmatprep.subr.mxu0 %v1137
        %1160 = vmatpush1.msra.mxu0 %v1136
        %1161 = vmatprep.subr.mxu0 %v1139
        %1162 = vmatpush1.msra.mxu0 %v1138
        %1163 = vmatprep.subr.mxu0 %v1141
        %1164 = vmatpush1.msra.mxu0 %v1140
        %1165 = vmatprep.subr.mxu0 %v1143
        %1166 = vmatpush1.msra.mxu0 %v1142
        %1167 = vmatprep.subr.mxu0 %v1145
        %1168 = vmatpush1.msra.mxu0 %v1144
        %1169 = vmatprep.subr.mxu0 0.0
        %1170 = vmatpush1.msra.mxu0 0.0
        %1171 = vmatprep.subr.mxu0 0.0
        %1172 = vmatpush1.msra.mxu0 0.0
        %1173 = vmatprep.subr.mxu0 0.0
        %1174 = vmatpush1.msra.mxu0 0.0
        %1175 = vmatprep.subr.mxu0 0.0
        %1176 = vmatpush1.msra.mxu0 0.0
        %1177 = vmatprep.subr.mxu0 0.0
        %1178 = vmatpush1.msra.mxu0 0.0
        %1179 = vmatprep.subr.mxu0 0.0
        %1180 = vmatpush1.msra.mxu0 0.0
        %1181 = vmatprep.subr.mxu0 0.0
        %1182 = vmatpush1.msra.mxu0 0.0
        %1183 = vmatprep.subr.mxu0 0.0
        %1184 = vmatpush1.msra.mxu0 0.0
        %1185 = vmatprep.subr.mxu0 0.0
        %1186 = vmatpush1.msra.mxu0 0.0
        %1187 = vmatprep.subr.mxu0 0.0
        %1188 = vmatpush1.msra.mxu0 0.0
        %1189 = vmatprep.subr.mxu0 0.0
        %1190 = vmatpush1.msra.mxu0 0.0
        %1191 = vmatprep.subr.mxu0 0.0
        %1192 = vmatpush1.msra.mxu0 0.0
        %1193 = vmatprep.subr.mxu0 0.0
        %1194 = vmatpush1.msra.mxu0 0.0
        %1195 = vmatprep.subr.mxu0 0.0
        %1196 = vmatpush1.msra.mxu0 0.0
        %1197 = vmatprep.subr.mxu0 0.0
        %1198 = vmatpush1.msra.mxu0 0.0
        %1199 = vmatprep.subr.mxu0 0.0
        %1200 = vmatpush1.msra.mxu0 0.0
        %1201 = vmatprep.subr.mxu0 0.0
        %1202 = vmatpush1.msra.mxu0 0.0
        %1203 = vmatprep.subr.mxu0 0.0
        %1204 = vmatpush1.msra.mxu0 0.0
        %1205 = vmatprep.subr.mxu0 0.0
        %1206 = vmatpush1.msra.mxu0 0.0
        %1207 = vmatprep.subr.mxu0 0.0
        %1208 = vmatpush1.msra.mxu0 0.0
        %1209 = vmatprep.subr.mxu0 0.0
        %1210 = vmatpush1.msra.mxu0 0.0
        %1211 = vmatprep.subr.mxu0 0.0
        %1212 = vmatpush1.msra.mxu0 0.0
        %1213 = vmatprep.subr.mxu0 0.0
        %1214 = vmatpush1.msra.mxu0 0.0
        %1215 = vmatprep.mubr.f32.mxu0 0.0
        %1216 = vmatmul.mubr.f32.gmra.mrb[0].mxu0 %v1149
        %v1217 = vpop.f32.mrb[0].mxu0
        %v1218 = vadd.f32 0.0, %v1217
        %v1219 = vpop.f32.mrb[0].mxu0
        %v1220 = vadd.f32 0.0, %v1219
        %1221 = vdwg.mxu0
        %v1222 = vadd.f32 %v1126, %v1218
        %v1223 = vadd.f32 %v1127, %v1220
        %v1224 = vadd.f32 %v1222, %v337
        %v1225 = vadd.f32 %v1223, %v338
        %1226 = vst [vmem:[%s336] sm:$0xff] %v1224
        %1227 = vst [vmem:[%s336 + $0x8] sm:$0xff] %v1225
        %s1228 = sand.u32 %s165, 1
        %s1229 = scalar_lea.sflag [#allocation4], %s1228
        %s1230 = sand.u32 %s165, 1
        %s1231 = smul.addr %s1230, 16
        %s1232 = scalar_lea.vmem [#allocation13], %s1231
        // Predicated region
        $region69: #{basic_block_3d.1} parent=43 // pred_check
          %p1233 = pneg %p175
        $region70: #{basic_block_3d.1} parent=43 // pred_check_branch
          %1235 = sbr.rel (%p1233) target = $region72
        $region71: #{basic_block_3d.1} parent=43 // pred_region
          %s1237 = ssub.s32 256, 256
          %1238 = vsyncadd %s1229, %s1237
          %s1239 = smul.addr %s26, 2
          %s1240 = smul.addr %s1239, 128
          %s1241 = scalar_lea.hbm %s6, %s1240
          %s1243 = sshll.u32 %s1232, 4
          %s1244 = int_to_ptr.vmem [resolvable:$true] %s1243
          %1246 = dma.vmem_to_hbm [thread:$0]  %s1244, 256, %s1241, %s1229
        $region72: #{basic_block_3d.1} parent=43 // pred_fallthru
          _
      $region44: #{basic_block_3d.1} parent=5 // pred_fallthru
        _
      %p1247 = scmp.le.s32.totalorder 2, %s21
      // Predicated region
      $region73: #{basic_block_3d.1} parent=5 // pred_check
        %p1248 = pneg %p1247
      $region74: #{basic_block_3d.1} parent=5 // pred_check_branch
        %1250 = sbr.rel (%p1248) target = $region76
      $region75: #{basic_block_3d.1} parent=5 // pred_region
        %s1251 = ssub.s32 %s21, 2
        // Predicated region
        $region77: #{basic_block_3d.1} parent=75 // pred_check
          %p1252 = pneg %p181
        $region78: #{basic_block_3d.1} parent=75 // pred_check_branch
          %1254 = sbr.rel (%p1252) target = $region80
        $region79: #{basic_block_3d.1} parent=75 // pred_region
          %s1255 = sand.u32 %s166, 1
          %s1256 = scalar_lea.sflag [#allocation4], %s1255
          %s1257 = sand.u32 %s166, 1
          %s1258 = smul.addr %s1257, 16
          %s1259 = scalar_lea.vmem [#allocation13], %s1258
          %1260 = dma.done %s1256, 256
        $region80: #{basic_block_3d.1} parent=75 // pred_fallthru
          _
      $region76: #{basic_block_3d.1} parent=5 // pred_fallthru
        _
    $region6: #{basic_block_3d.1} parent=1 // loop_footer
      %s25 = sadd.s32 1, %s21
    $region7: #{basic_block_3d.1} parent=1 // loop_footer_branch
      %20 = sbr.rel target = $region3
    $region8: #{basic_block_3d.1} parent=1 // loop_exit
      _
    %1261 = vsyncpa [#allocation3], 1
    %s1262 = scalar_lea.sflag [#allocation3], 1
    %1263 = vsyncpa %s1262, 1
    %1264 = vsyncpa [#allocation6], 1
    %1265 = vsyncpa [#allocation9], 1
    %1266 = vsyncpa [#allocation12], 1
    %1267 = vsyncpa [#allocation4], 1
    %s1268 = scalar_lea.sflag [#allocation4], 1
    %1269 = vsyncpa %s1268, 1

</llo_original>
